<compile_context>
chip_gen: v6e
topology: v6e:2x2x1
jax: 0.10.0
libtpu: 0.0.40
codegen_flags: <defaults>
</compile_context>

<pallas_src>
import functools

import jax
import jax.numpy as jnp
from jax import lax
from jax.experimental import pallas as pl
from jax.experimental.pallas import tpu as pltpu

BN_EPS = 2e-5


def _round_up(v, m):
    return (v + m - 1) // m * m


# --------------------------- fused Pallas kernel ---------------------------

def _vargnet_block_kernel(x_ref,
                          d1w_ref, d1b_ref, p1w_ref, p1b_ref,
                          d2w_ref, d2b_ref, p2w_ref, p2b_ref,
                          se1t_ref, se2_ref,
                          o_ref, *, H, W, B, E):
    """Whole vargnet_block for B samples, channel-major (C, B*H*W) layout.

    x_ref : (C1, B*HW)        input slab (== shortcut, dim_match=True), f32
    d*w   : (9, E, Cin, 1)    depthwise taps, BN scale folded in (tap-major leading dims)
    d*b   : (E, Cin, 1)       folded depthwise BN shift
    p*w   : (Cout, E*Cin)     1x1 weights, BN scale folded, de-interleaved; bf16 MXU operand
    p*b   : (Cout, 1)         folded pointwise BN shift
    se1t  : (C3, C3//r)       SE fc1 transposed      se2 : (C3, C3//r)  SE fc2
    o_ref : (C3, B*HW)
    """
    f32 = jnp.float32
    HW = H * W
    LW = B * HW

    # Boundary masks for the circular lane rolls (one (1, LW) iota + 4 compares per step).
    lane = lax.broadcasted_iota(jnp.int32, (1, LW), 1)
    w_pos = jnp.bitwise_and(lane, W - 1) if (W & (W - 1)) == 0 else lane % W
    hw_pos = jnp.bitwise_and(lane, HW - 1) if (HW & (HW - 1)) == 0 else lane % HW
    m_left = jnp.where(w_pos >= 1, 1.0, 0.0)        # kx = -1 : source col w-1 valid
    m_right = jnp.where(w_pos <= W - 2, 1.0, 0.0)   # kx = +1
    m_up = jnp.where(hw_pos >= W, 1.0, 0.0)         # ky = -1 : source row h-1 valid
    m_down = jnp.where(hw_pos < HW - W, 1.0, 0.0)   # ky = +1

    def swish(v):
        return v * jax.nn.sigmoid(v)

    def lroll(v, s):
        s = s % LW
        return v if s == 0 else pltpu.roll(v, s, 1)

    def shifted9(v):
        # Nine zero-padded 3x3-stencil shifts of v (Cin, LW), tap order t = (ky+1)*3+(kx+1):
        #   shifted_t[:, q] = v[:, q + ky*W + kx]   (0 outside the image / sample).
        # Rolls run on the XLU; wrap-around across row/sample boundaries is zeroed by masks.
        hs = (lroll(v, 1) * m_left, v, lroll(v, -1) * m_right)
        out = []
        for ky, m_v in ((-1, m_up), (0, None), (1, m_down)):
            for hx in hs:
                out.append(hx if ky == 0 else lroll(hx, -ky * W) * m_v)
        return out

    def separable(v, dw_ref, db_ref, pw_ref, pb_ref, swish_out):
        sh = shifted9(v)
        cols = []
        for e in range(E):                          # grouped dw (group_base=1), expansion copies
            y = sh[0] * dw_ref[0, e].astype(f32)    # (Cin, 1) lane-broadcast FMA per tap
            for t in range(1, 9):
                y = y + sh[t] * dw_ref[t, e].astype(f32)
            cols.append(swish(y + db_ref[e].astype(f32)))        # folded dw BN + Swish
        y = cols[0] if E == 1 else jnp.concatenate(cols, axis=0)  # (E*Cin, LW)
        # Single fused MXU matmul over all expansion copies (K = E*Cin), bf16 in / f32 acc.
        acc = jnp.dot(pw_ref[...], y.astype(pw_ref.dtype), preferred_element_type=f32)
        acc = acc + pb_ref[...].astype(f32)                       # folded pw BN shift
        return swish(acc) if swish_out else acc

    x = x_ref[...].astype(f32)
    y = separable(x, d1w_ref, d1b_ref, p1w_ref, p1b_ref, True)
    y = separable(y, d2w_ref, d2b_ref, p2w_ref, p2b_ref, False)

    # SE tail on VPU/XLU (no 1-column MXU dots on the epilogue) + residual + final Swish.
    se1t = se1t_ref[...].astype(f32)                # (C3, C3r)
    se2 = se2_ref[...].astype(f32)                  # (C3, C3r)
    c3 = y.shape[0]
    scales = []
    for b in range(B):                              # aligned static lane slices, per sample
        yb = y[:, b * HW:(b + 1) * HW]
        pooled = jnp.sum(yb, axis=1, keepdims=True) * (1.0 / HW)            # (C3, 1)
        hrow = swish(jnp.sum(se1t * pooled, axis=0, keepdims=True))         # (1, C3r)
        s_b = jax.nn.sigmoid(jnp.sum(se2 * hrow, axis=1, keepdims=True))    # (C3, 1)
        scales.append(s_b if B == 1 else jnp.broadcast_to(s_b, (c3, HW)))
    s = scales[0] if B == 1 else jnp.concatenate(scales, axis=1)
    o_ref[...] = swish(x + y * s).astype(o_ref.dtype)


# --------------------------- parameter folding (wrapper side) ---------------------------

def _fold_bn(gamma, beta, mean, var):
    scale = gamma / jnp.sqrt(var + BN_EPS)
    return scale, beta - mean * scale


def _prep_separable(p, E, cin, cin_p, cout, cout_p, mxu_dtype):
    # Depthwise: torch layout (cin*E, 1, 3, 3), groups=cin (group_base=1) so output channel
    # co = c*E + e reads input channel c.  Fold BN scale into the taps, de-interleave to row
    # e*cin_p + c, zero-pad channels to multiples of 8 (exact: padded taps/bias/columns = 0).
    dscale, dshift = _fold_bn(*p["dw_bn"])
    dw = p["dw_w"].reshape(cin * E, 9) * dscale[:, None]
    dw = dw.reshape(cin, E, 9).transpose(2, 1, 0)                       # (9, E, cin)
    dw_taps = jnp.zeros((9, E, cin_p, 1), jnp.float32).at[:, :, :cin, 0].set(dw)
    db = dshift.reshape(cin, E).T                                       # (E, cin)
    dw_bias = jnp.zeros((E, cin_p, 1), jnp.float32).at[:, :cin, 0].set(db)

    # Pointwise: torch layout (cout, cin*E, 1, 1).  Fold BN scale, reorder columns to
    # e*cin_p + c so ONE matmul covers all expansion copies; bf16 for the MXU (f32 acc).
    pscale, pshift = _fold_bn(*p["pw_bn"])
    pw = p["pw_w"].reshape(cout, cin * E) * pscale[:, None]
    pw = pw.reshape(cout, cin, E).transpose(0, 2, 1)                    # (cout, E, cin)
    pw_pad = jnp.zeros((cout_p, E, cin_p), jnp.float32).at[:cout, :, :cin].set(pw)
    pw_w = pw_pad.reshape(cout_p, E * cin_p).astype(mxu_dtype)
    pw_bias = jnp.zeros((cout_p, 1), jnp.float32).at[:cout, 0].set(pshift)
    return dw_taps, dw_bias, pw_w, pw_bias


def _pick_batch_block(n, hw):
    # Largest divisor of n that (a) keeps >= 2 grid steps (v7x has 2 TensorCores) and
    # (b) keeps the lane axis of one block <= 4096 so per-step tiles stay tiny in VMEM.
    b = 1
    for cand in range(1, n + 1):
        if n % cand == 0 and n // cand >= 2 and cand * hw <= 4096:
            b = cand
    return b


# --------------------------- vargnet_block forward ---------------------------

def vargnet_block_fwd(x_nchw, params, expansion=2, mxu_dtype=jnp.bfloat16):
    N, C1, H, W = x_nchw.shape
    HW = H * W
    E = expansion

    C2 = params["part_1"]["pw_w"].shape[0]
    C3 = params["part_2"]["pw_w"].shape[0]
    assert C3 == C1, "dim_match=True requires channels_3 == channels_1"
    C3r = params["se_fc1"].shape[0]
    C1p, C2p = _round_up(C1, 8), _round_up(C2, 8)
    C3p = C1p

    d1w, d1b, p1w, p1b = _prep_separable(params["part_1"], E, C1, C1p, C2, C2p, mxu_dtype)
    d2w, d2b, p2w, p2b = _prep_separable(params["part_2"], E, C2, C2p, C3, C3p, mxu_dtype)
    se1t = jnp.zeros((C3p, C3r), jnp.float32).at[:C3, :].set(
        params["se_fc1"].reshape(C3r, C3).T)
    se2p = jnp.zeros((C3p, C3r), jnp.float32).at[:C3, :].set(
        params["se_fc2"].reshape(C3, C3r))

    B = _pick_batch_block(N, HW)
    G = N // B
    LW = B * HW

    x = x_nchw.reshape(N, C1, HW)
    if C1p != C1:
        x = jnp.pad(x, ((0, 0), (0, C1p - C1), (0, 0)))
    # (G, B, C, HW) -> (G, C, B*HW): lane-dense slabs; a pure reshape when B == 1.
    xb = x.reshape(G, B, C1p, HW).transpose(0, 2, 1, 3).reshape(G, C1p, LW)

    operands = (xb, d1w, d1b, p1w, p1b, d2w, d2b, p2w, p2b, se1t, se2p)
    cost = pl.CostEstimate(
        flops=int(2 * N * HW * (9 * E * C1 + E * C1 * C2 + 9 * E * C2 + E * C2 * C3)
                  + 4 * N * C3 * C3r),
        transcendentals=int(N * HW * (E * C1 + C2 + E * C2 + C3) + N * (C3r + 2 * C3)),
        bytes_accessed=int(sum(op.size * op.dtype.itemsize for op in operands)
                           + N * C3p * HW * x_nchw.dtype.itemsize))

    kernel = functools.partial(_vargnet_block_kernel, H=H, W=W, B=B, E=E)
    # Weight inputs use constant index_maps; they are tiny, so the default double-buffered
    # copy is accepted (a single-buffered pipeline_mode would trim it on newer APIs).
    out = pl.pallas_call(
        kernel,
        out_shape=jax.ShapeDtypeStruct((G, C3p, LW), x_nchw.dtype),
        grid=(G,),
        in_specs=[
            pl.BlockSpec((pl.Squeezed(), C1p, LW), lambda g: (g, 0, 0)),
            pl.BlockSpec(d1w.shape, lambda g: (0, 0, 0, 0)),
            pl.BlockSpec(d1b.shape, lambda g: (0, 0, 0)),
            pl.BlockSpec(p1w.shape, lambda g: (0, 0)),
            pl.BlockSpec(p1b.shape, lambda g: (0, 0)),
            pl.BlockSpec(d2w.shape, lambda g: (0, 0, 0, 0)),
            pl.BlockSpec(d2b.shape, lambda g: (0, 0, 0)),
            pl.BlockSpec(p2w.shape, lambda g: (0, 0)),
            pl.BlockSpec(p2b.shape, lambda g: (0, 0)),
            pl.BlockSpec(se1t.shape, lambda g: (0, 0)),
            pl.BlockSpec(se2p.shape, lambda g: (0, 0)),
        ],
        out_specs=pl.BlockSpec((pl.Squeezed(), C3p, LW), lambda g: (g, 0, 0)),
        compiler_params=pltpu.CompilerParams(dimension_semantics=("parallel",)),
        cost_estimate=cost,
    )(*operands)

    out = out.reshape(G, C3p, B, HW).transpose(0, 2, 1, 3).reshape(N, C3p, H, W)
    return out[:, :C3] if C3p != C3 else out


# --------------------------- pure-JAX reference ---------------------------

def _swish(x):
    return x * jax.nn.sigmoid(x)


def _ref_bn(x, gamma, beta, mean, var):
    inv = 1.0 / jnp.sqrt(var + BN_EPS)
    return (x - mean[None, :, None, None]) * inv[None, :, None, None] * \
        gamma[None, :, None, None] + beta[None, :, None, None]


def _ref_sep(x, p, pw_swish):
    cin = x.shape[1]
    y = lax.conv_general_dilated(x, p["dw_w"], (1, 1), ((1, 1), (1, 1)),
                                 dimension_numbers=("NCHW", "OIHW", "NCHW"),
                                 feature_group_count=cin)
    y = _swish(_ref_bn(y, *p["dw_bn"]))
    y = lax.conv_general_dilated(y, p["pw_w"], (1, 1), ((0, 0), (0, 0)),
                                 dimension_numbers=("NCHW", "OIHW", "NCHW"))
    y = _ref_bn(y, *p["pw_bn"])
    return _swish(y) if pw_swish else y


def ref_forward(x, params):
    sc = x
    y = _ref_sep(x, params["part_1"], True)
    y = _ref_sep(y, params["part_2"], False)
    pooled = jnp.mean(y, axis=(2, 3), keepdims=True)
    h = lax.conv_general_dilated(pooled, params["se_fc1"], (1, 1), ((0, 0), (0, 0)),
                                 dimension_numbers=("NCHW", "OIHW", "NCHW"))
    h = _swish(h)
    s = jax.nn.sigmoid(
        lax.conv_general_dilated(h, params["se_fc2"], (1, 1), ((0, 0), (0, 0)),
                                 dimension_numbers=("NCHW", "OIHW", "NCHW")))
    return _swish(sc + y * s)


# --------------------------- param init & main ---------------------------

def _bn_params(key, c):
    k1, k2, k3, k4 = jax.random.split(key, 4)
    gamma = 1.0 + 0.1 * jax.random.normal(k1, (c,), jnp.float32)
    beta = 0.1 * jax.random.normal(k2, (c,), jnp.float32)
    mean = 0.1 * jax.random.normal(k3, (c,), jnp.float32)
    var = 0.5 + 0.5 * jnp.abs(jax.random.normal(k4, (c,), jnp.float32))
    return (gamma, beta, mean, var)


def make_params(key, c1, c2, c3, reduction, expansion):
    ks = jax.random.split(key, 12)
    w = lambda k, shape: 0.2 * jax.random.normal(k, shape, jnp.float32)
    part_1 = dict(
        dw_w=w(ks[0], (c1 * expansion, 1, 3, 3)),
        dw_bn=_bn_params(ks[1], c1 * expansion),
        pw_w=w(ks[2], (c2, c1 * expansion, 1, 1)),
        pw_bn=_bn_params(ks[3], c2),
    )
    part_2 = dict(
        dw_w=w(ks[4], (c2 * expansion, 1, 3, 3)),
        dw_bn=_bn_params(ks[5], c2 * expansion),
        pw_w=w(ks[6], (c3, c2 * expansion, 1, 1)),
        pw_bn=_bn_params(ks[7], c3),
    )
    se_fc1 = w(ks[8], (c3 // reduction, c3, 1, 1))
    se_fc2 = w(ks[9], (c3, c3 // reduction, 1, 1))
    return dict(part_1=part_1, part_2=part_2, se_fc1=se_fc1, se_fc2=se_fc2)


if __name__ == "__main__":
    # small shapes: N=2, C1=C3=8, C2=12, H=W=16, reduction=4, expansion=2, dim_match=True
    N, C1, C2, C3, H, W = 2, 8, 12, 8, 16, 16
    reduction, expansion = 4, 2

    key = jax.random.PRNGKey(0)
    kx, kp = jax.random.split(key)
    x = jax.random.normal(kx, (N, C1, H, W), jnp.float32)
    params = make_params(kp, C1, C2, C3, reduction, expansion)

    fwd = jax.jit(functools.partial(vargnet_block_fwd, expansion=expansion))

    # B_blk = 1 path (grid of 2 steps).
    out = jax.block_until_ready(fwd(x, params))
    ref = jax.block_until_ready(ref_forward(x, params))
    assert out.shape == (N, C3, H, W), out.shape
    # Tolerance accounts for bf16 MXU operands (f32 accumulation) in the pointwise matmuls.
    max_err = float(jnp.max(jnp.abs(out - ref)))
    assert max_err < 3e-2, f"mismatch vs reference: {max_err}"

    # Batch-blocked path (B_blk = 2, grid still 2 steps) to exercise (C, B*HW) slabs.
    x4 = jax.random.normal(jax.random.PRNGKey(1), (4, C1, H, W), jnp.float32)
    out4 = jax.block_until_ready(fwd(x4, params))
    ref4 = ref_forward(x4, params)
    max_err4 = float(jnp.max(jnp.abs(out4 - ref4)))
    assert out4.shape == (4, C3, H, W), out4.shape
    assert max_err4 < 3e-2, f"batch-blocked mismatch vs reference: {max_err4}"

    print("KERNEL_OK")
</pallas_src>

<mosaic_0001>
module attributes {stable_mosaic.version = 11 : i64} {
  func.func @_vargnet_block_kernel(%arg0: i32, %arg1: memref<1x8x256xf32, #tpu.memory_space<vmem>>, %arg2: memref<9x2x8x1xf32, #tpu.memory_space<vmem>>, %arg3: memref<2x8x1xf32, #tpu.memory_space<vmem>>, %arg4: memref<16x16xbf16, #tpu.memory_space<vmem>>, %arg5: memref<16x1xf32, #tpu.memory_space<vmem>>, %arg6: memref<9x2x16x1xf32, #tpu.memory_space<vmem>>, %arg7: memref<2x16x1xf32, #tpu.memory_space<vmem>>, %arg8: memref<8x32xbf16, #tpu.memory_space<vmem>>, %arg9: memref<8x1xf32, #tpu.memory_space<vmem>>, %arg10: memref<8x2xf32, #tpu.memory_space<vmem>>, %arg11: memref<8x2xf32, #tpu.memory_space<vmem>>, %arg12: memref<1x8x256xf32, #tpu.memory_space<vmem>>) attributes {dimension_semantics = [#tpu.dimension_semantics<parallel>], iteration_bounds = array<i64: 2>, scalar_prefetch = 0 : i64, scratch_operands = 0 : i64, tpu.core_type = #tpu.core_type<tc>, window_params = [{transform_indices = @transform_0, window_bounds = array<i64: 1, 8, 256>}, {pipeline_mode = #tpu.pipeline_mode<synchronous>, transform_indices = @transform_1, window_bounds = array<i64: 9, 2, 8, 1>}, {pipeline_mode = #tpu.pipeline_mode<synchronous>, transform_indices = @transform_2, window_bounds = array<i64: 2, 8, 1>}, {pipeline_mode = #tpu.pipeline_mode<synchronous>, transform_indices = @transform_3, window_bounds = array<i64: 16, 16>}, {pipeline_mode = #tpu.pipeline_mode<synchronous>, transform_indices = @transform_4, window_bounds = array<i64: 16, 1>}, {pipeline_mode = #tpu.pipeline_mode<synchronous>, transform_indices = @transform_5, window_bounds = array<i64: 9, 2, 16, 1>}, {pipeline_mode = #tpu.pipeline_mode<synchronous>, transform_indices = @transform_6, window_bounds = array<i64: 2, 16, 1>}, {pipeline_mode = #tpu.pipeline_mode<synchronous>, transform_indices = @transform_7, window_bounds = array<i64: 8, 32>}, {pipeline_mode = #tpu.pipeline_mode<synchronous>, transform_indices = @transform_8, window_bounds = array<i64: 8, 1>}, {pipeline_mode = #tpu.pipeline_mode<synchronous>, transform_indices = @transform_9, window_bounds = array<i64: 8, 2>}, {pipeline_mode = #tpu.pipeline_mode<synchronous>, transform_indices = @transform_10, window_bounds = array<i64: 8, 2>}, {transform_indices = @transform_11, window_bounds = array<i64: 1, 8, 256>}]} {
    %0 = tpu.iota {dimensions = array<i32: 1>} : vector<1x256xi32>
    %c15_i32 = arith.constant 15 : i32
    %1 = vector.broadcast %c15_i32 : i32 to vector<1x256xi32>
    %2 = arith.andi %0, %1 : vector<1x256xi32>
    %c255_i32 = arith.constant 255 : i32
    %3 = vector.broadcast %c255_i32 : i32 to vector<1x256xi32>
    %4 = arith.andi %0, %3 : vector<1x256xi32>
    %c1_i32 = arith.constant 1 : i32
    %5 = vector.broadcast %c1_i32 : i32 to vector<1x256xi32>
    %6 = arith.cmpi sge, %2, %5 : vector<1x256xi32>
    %cst = arith.constant 1.000000e+00 : f32
    %cst_0 = arith.constant 0.000000e+00 : f32
    %7 = vector.broadcast %cst : f32 to vector<1x256xf32>
    %8 = vector.broadcast %cst_0 : f32 to vector<1x256xf32>
    %9 = arith.select %6, %7, %8 : vector<1x256xi1>, vector<1x256xf32>
    %c14_i32 = arith.constant 14 : i32
    %10 = vector.broadcast %c14_i32 : i32 to vector<1x256xi32>
    %11 = arith.cmpi sle, %2, %10 : vector<1x256xi32>
    %cst_1 = arith.constant 1.000000e+00 : f32
    %cst_2 = arith.constant 0.000000e+00 : f32
    %12 = vector.broadcast %cst_1 : f32 to vector<1x256xf32>
    %13 = vector.broadcast %cst_2 : f32 to vector<1x256xf32>
    %14 = arith.select %11, %12, %13 : vector<1x256xi1>, vector<1x256xf32>
    %c16_i32 = arith.constant 16 : i32
    %15 = vector.broadcast %c16_i32 : i32 to vector<1x256xi32>
    %16 = arith.cmpi sge, %4, %15 : vector<1x256xi32>
    %cst_3 = arith.constant 1.000000e+00 : f32
    %cst_4 = arith.constant 0.000000e+00 : f32
    %17 = vector.broadcast %cst_3 : f32 to vector<1x256xf32>
    %18 = vector.broadcast %cst_4 : f32 to vector<1x256xf32>
    %19 = arith.select %16, %17, %18 : vector<1x256xi1>, vector<1x256xf32>
    %c240_i32 = arith.constant 240 : i32
    %20 = vector.broadcast %c240_i32 : i32 to vector<1x256xi32>
    %21 = arith.cmpi slt, %4, %20 : vector<1x256xi32>
    %cst_5 = arith.constant 1.000000e+00 : f32
    %cst_6 = arith.constant 0.000000e+00 : f32
    %22 = vector.broadcast %cst_5 : f32 to vector<1x256xf32>
    %23 = vector.broadcast %cst_6 : f32 to vector<1x256xf32>
    %24 = arith.select %21, %22, %23 : vector<1x256xi1>, vector<1x256xf32>
    %c0 = arith.constant 0 : index
    %c0_7 = arith.constant 0 : index
    %c0_8 = arith.constant 0 : index
    %25 = vector.load %arg1[%c0, %c0_7, %c0_8] : memref<1x8x256xf32, #tpu.memory_space<vmem>>, vector<1x8x256xf32>
    %26 = vector.shape_cast %25 : vector<1x8x256xf32> to vector<8x256xf32>
    %c1_i32_9 = arith.constant 1 : i32
    %27 = tpu.dynamic_rotate %26 by %c1_i32_9 dim 1 : vector<8x256xf32>, i32 -> vector<8x256xf32>
    %28 = vector.broadcast %9 : vector<1x256xf32> to vector<8x256xf32>
    %29 = arith.mulf %27, %28 : vector<8x256xf32>
    %c255_i32_10 = arith.constant 255 : i32
    %30 = tpu.dynamic_rotate %26 by %c255_i32_10 dim 1 : vector<8x256xf32>, i32 -> vector<8x256xf32>
    %31 = vector.broadcast %14 : vector<1x256xf32> to vector<8x256xf32>
    %32 = arith.mulf %30, %31 : vector<8x256xf32>
    %c16_i32_11 = arith.constant 16 : i32
    %33 = tpu.dynamic_rotate %29 by %c16_i32_11 dim 1 : vector<8x256xf32>, i32 -> vector<8x256xf32>
    %34 = vector.broadcast %19 : vector<1x256xf32> to vector<8x256xf32>
    %35 = arith.mulf %33, %34 : vector<8x256xf32>
    %c16_i32_12 = arith.constant 16 : i32
    %36 = tpu.dynamic_rotate %26 by %c16_i32_12 dim 1 : vector<8x256xf32>, i32 -> vector<8x256xf32>
    %37 = vector.broadcast %19 : vector<1x256xf32> to vector<8x256xf32>
    %38 = arith.mulf %36, %37 : vector<8x256xf32>
    %c16_i32_13 = arith.constant 16 : i32
    %39 = tpu.dynamic_rotate %32 by %c16_i32_13 dim 1 : vector<8x256xf32>, i32 -> vector<8x256xf32>
    %40 = vector.broadcast %19 : vector<1x256xf32> to vector<8x256xf32>
    %41 = arith.mulf %39, %40 : vector<8x256xf32>
    %c240_i32_14 = arith.constant 240 : i32
    %42 = tpu.dynamic_rotate %29 by %c240_i32_14 dim 1 : vector<8x256xf32>, i32 -> vector<8x256xf32>
    %43 = vector.broadcast %24 : vector<1x256xf32> to vector<8x256xf32>
    %44 = arith.mulf %42, %43 : vector<8x256xf32>
    %c240_i32_15 = arith.constant 240 : i32
    %45 = tpu.dynamic_rotate %26 by %c240_i32_15 dim 1 : vector<8x256xf32>, i32 -> vector<8x256xf32>
    %46 = vector.broadcast %24 : vector<1x256xf32> to vector<8x256xf32>
    %47 = arith.mulf %45, %46 : vector<8x256xf32>
    %c240_i32_16 = arith.constant 240 : i32
    %48 = tpu.dynamic_rotate %32 by %c240_i32_16 dim 1 : vector<8x256xf32>, i32 -> vector<8x256xf32>
    %49 = vector.broadcast %24 : vector<1x256xf32> to vector<8x256xf32>
    %50 = arith.mulf %48, %49 : vector<8x256xf32>
    %c0_17 = arith.constant 0 : index
    %c0_18 = arith.constant 0 : index
    %c0_19 = arith.constant 0 : index
    %c0_20 = arith.constant 0 : index
    %51 = vector.load %arg2[%c0_17, %c0_18, %c0_19, %c0_20] : memref<9x2x8x1xf32, #tpu.memory_space<vmem>>, vector<1x1x8x1xf32>
    %52 = vector.shape_cast %51 : vector<1x1x8x1xf32> to vector<8x1xf32>
    %53 = vector.broadcast %52 : vector<8x1xf32> to vector<8x256xf32>
    %54 = arith.mulf %35, %53 : vector<8x256xf32>
    %c1 = arith.constant 1 : index
    %c0_21 = arith.constant 0 : index
    %c0_22 = arith.constant 0 : index
    %c0_23 = arith.constant 0 : index
    %55 = vector.load %arg2[%c1, %c0_21, %c0_22, %c0_23] : memref<9x2x8x1xf32, #tpu.memory_space<vmem>>, vector<1x1x8x1xf32>
    %56 = vector.shape_cast %55 : vector<1x1x8x1xf32> to vector<8x1xf32>
    %57 = vector.broadcast %56 : vector<8x1xf32> to vector<8x256xf32>
    %58 = arith.mulf %38, %57 : vector<8x256xf32>
    %59 = arith.addf %54, %58 : vector<8x256xf32>
    %c2 = arith.constant 2 : index
    %c0_24 = arith.constant 0 : index
    %c0_25 = arith.constant 0 : index
    %c0_26 = arith.constant 0 : index
    %60 = vector.load %arg2[%c2, %c0_24, %c0_25, %c0_26] : memref<9x2x8x1xf32, #tpu.memory_space<vmem>>, vector<1x1x8x1xf32>
    %61 = vector.shape_cast %60 : vector<1x1x8x1xf32> to vector<8x1xf32>
    %62 = vector.broadcast %61 : vector<8x1xf32> to vector<8x256xf32>
    %63 = arith.mulf %41, %62 : vector<8x256xf32>
    %64 = arith.addf %59, %63 : vector<8x256xf32>
    %c3 = arith.constant 3 : index
    %c0_27 = arith.constant 0 : index
    %c0_28 = arith.constant 0 : index
    %c0_29 = arith.constant 0 : index
    %65 = vector.load %arg2[%c3, %c0_27, %c0_28, %c0_29] : memref<9x2x8x1xf32, #tpu.memory_space<vmem>>, vector<1x1x8x1xf32>
    %66 = vector.shape_cast %65 : vector<1x1x8x1xf32> to vector<8x1xf32>
    %67 = vector.broadcast %66 : vector<8x1xf32> to vector<8x256xf32>
    %68 = arith.mulf %29, %67 : vector<8x256xf32>
    %69 = arith.addf %64, %68 : vector<8x256xf32>
    %c4 = arith.constant 4 : index
    %c0_30 = arith.constant 0 : index
    %c0_31 = arith.constant 0 : index
    %c0_32 = arith.constant 0 : index
    %70 = vector.load %arg2[%c4, %c0_30, %c0_31, %c0_32] : memref<9x2x8x1xf32, #tpu.memory_space<vmem>>, vector<1x1x8x1xf32>
    %71 = vector.shape_cast %70 : vector<1x1x8x1xf32> to vector<8x1xf32>
    %72 = vector.broadcast %71 : vector<8x1xf32> to vector<8x256xf32>
    %73 = arith.mulf %26, %72 : vector<8x256xf32>
    %74 = arith.addf %69, %73 : vector<8x256xf32>
    %c5 = arith.constant 5 : index
    %c0_33 = arith.constant 0 : index
    %c0_34 = arith.constant 0 : index
    %c0_35 = arith.constant 0 : index
    %75 = vector.load %arg2[%c5, %c0_33, %c0_34, %c0_35] : memref<9x2x8x1xf32, #tpu.memory_space<vmem>>, vector<1x1x8x1xf32>
    %76 = vector.shape_cast %75 : vector<1x1x8x1xf32> to vector<8x1xf32>
    %77 = vector.broadcast %76 : vector<8x1xf32> to vector<8x256xf32>
    %78 = arith.mulf %32, %77 : vector<8x256xf32>
    %79 = arith.addf %74, %78 : vector<8x256xf32>
    %c6 = arith.constant 6 : index
    %c0_36 = arith.constant 0 : index
    %c0_37 = arith.constant 0 : index
    %c0_38 = arith.constant 0 : index
    %80 = vector.load %arg2[%c6, %c0_36, %c0_37, %c0_38] : memref<9x2x8x1xf32, #tpu.memory_space<vmem>>, vector<1x1x8x1xf32>
    %81 = vector.shape_cast %80 : vector<1x1x8x1xf32> to vector<8x1xf32>
    %82 = vector.broadcast %81 : vector<8x1xf32> to vector<8x256xf32>
    %83 = arith.mulf %44, %82 : vector<8x256xf32>
    %84 = arith.addf %79, %83 : vector<8x256xf32>
    %c7 = arith.constant 7 : index
    %c0_39 = arith.constant 0 : index
    %c0_40 = arith.constant 0 : index
    %c0_41 = arith.constant 0 : index
    %85 = vector.load %arg2[%c7, %c0_39, %c0_40, %c0_41] : memref<9x2x8x1xf32, #tpu.memory_space<vmem>>, vector<1x1x8x1xf32>
    %86 = vector.shape_cast %85 : vector<1x1x8x1xf32> to vector<8x1xf32>
    %87 = vector.broadcast %86 : vector<8x1xf32> to vector<8x256xf32>
    %88 = arith.mulf %47, %87 : vector<8x256xf32>
    %89 = arith.addf %84, %88 : vector<8x256xf32>
    %c8 = arith.constant 8 : index
    %c0_42 = arith.constant 0 : index
    %c0_43 = arith.constant 0 : index
    %c0_44 = arith.constant 0 : index
    %90 = vector.load %arg2[%c8, %c0_42, %c0_43, %c0_44] : memref<9x2x8x1xf32, #tpu.memory_space<vmem>>, vector<1x1x8x1xf32>
    %91 = vector.shape_cast %90 : vector<1x1x8x1xf32> to vector<8x1xf32>
    %92 = vector.broadcast %91 : vector<8x1xf32> to vector<8x256xf32>
    %93 = arith.mulf %50, %92 : vector<8x256xf32>
    %94 = arith.addf %89, %93 : vector<8x256xf32>
    %c0_45 = arith.constant 0 : index
    %c0_46 = arith.constant 0 : index
    %c0_47 = arith.constant 0 : index
    %95 = vector.load %arg3[%c0_45, %c0_46, %c0_47] : memref<2x8x1xf32, #tpu.memory_space<vmem>>, vector<1x8x1xf32>
    %96 = vector.shape_cast %95 : vector<1x8x1xf32> to vector<8x1xf32>
    %97 = vector.broadcast %96 : vector<8x1xf32> to vector<8x256xf32>
    %98 = arith.addf %94, %97 : vector<8x256xf32>
    %99 = arith.negf %98 : vector<8x256xf32>
    %100 = math.exp %99 : vector<8x256xf32>
    %cst_48 = arith.constant 1.000000e+00 : f32
    %101 = vector.broadcast %cst_48 : f32 to vector<8x256xf32>
    %102 = arith.addf %101, %100 : vector<8x256xf32>
    %103 = arith.divf %101, %102 : vector<8x256xf32>
    %104 = arith.mulf %98, %103 : vector<8x256xf32>
    %c0_49 = arith.constant 0 : index
    %c1_50 = arith.constant 1 : index
    %c0_51 = arith.constant 0 : index
    %c0_52 = arith.constant 0 : index
    %105 = vector.load %arg2[%c0_49, %c1_50, %c0_51, %c0_52] : memref<9x2x8x1xf32, #tpu.memory_space<vmem>>, vector<1x1x8x1xf32>
    %106 = vector.shape_cast %105 : vector<1x1x8x1xf32> to vector<8x1xf32>
    %107 = vector.broadcast %106 : vector<8x1xf32> to vector<8x256xf32>
    %108 = arith.mulf %35, %107 : vector<8x256xf32>
    %c1_53 = arith.constant 1 : index
    %c1_54 = arith.constant 1 : index
    %c0_55 = arith.constant 0 : index
    %c0_56 = arith.constant 0 : index
    %109 = vector.load %arg2[%c1_53, %c1_54, %c0_55, %c0_56] : memref<9x2x8x1xf32, #tpu.memory_space<vmem>>, vector<1x1x8x1xf32>
    %110 = vector.shape_cast %109 : vector<1x1x8x1xf32> to vector<8x1xf32>
    %111 = vector.broadcast %110 : vector<8x1xf32> to vector<8x256xf32>
    %112 = arith.mulf %38, %111 : vector<8x256xf32>
    %113 = arith.addf %108, %112 : vector<8x256xf32>
    %c2_57 = arith.constant 2 : index
    %c1_58 = arith.constant 1 : index
    %c0_59 = arith.constant 0 : index
    %c0_60 = arith.constant 0 : index
    %114 = vector.load %arg2[%c2_57, %c1_58, %c0_59, %c0_60] : memref<9x2x8x1xf32, #tpu.memory_space<vmem>>, vector<1x1x8x1xf32>
    %115 = vector.shape_cast %114 : vector<1x1x8x1xf32> to vector<8x1xf32>
    %116 = vector.broadcast %115 : vector<8x1xf32> to vector<8x256xf32>
    %117 = arith.mulf %41, %116 : vector<8x256xf32>
    %118 = arith.addf %113, %117 : vector<8x256xf32>
    %c3_61 = arith.constant 3 : index
    %c1_62 = arith.constant 1 : index
    %c0_63 = arith.constant 0 : index
    %c0_64 = arith.constant 0 : index
    %119 = vector.load %arg2[%c3_61, %c1_62, %c0_63, %c0_64] : memref<9x2x8x1xf32, #tpu.memory_space<vmem>>, vector<1x1x8x1xf32>
    %120 = vector.shape_cast %119 : vector<1x1x8x1xf32> to vector<8x1xf32>
    %121 = vector.broadcast %120 : vector<8x1xf32> to vector<8x256xf32>
    %122 = arith.mulf %29, %121 : vector<8x256xf32>
    %123 = arith.addf %118, %122 : vector<8x256xf32>
    %c4_65 = arith.constant 4 : index
    %c1_66 = arith.constant 1 : index
    %c0_67 = arith.constant 0 : index
    %c0_68 = arith.constant 0 : index
    %124 = vector.load %arg2[%c4_65, %c1_66, %c0_67, %c0_68] : memref<9x2x8x1xf32, #tpu.memory_space<vmem>>, vector<1x1x8x1xf32>
    %125 = vector.shape_cast %124 : vector<1x1x8x1xf32> to vector<8x1xf32>
    %126 = vector.broadcast %125 : vector<8x1xf32> to vector<8x256xf32>
    %127 = arith.mulf %26, %126 : vector<8x256xf32>
    %128 = arith.addf %123, %127 : vector<8x256xf32>
    %c5_69 = arith.constant 5 : index
    %c1_70 = arith.constant 1 : index
    %c0_71 = arith.constant 0 : index
    %c0_72 = arith.constant 0 : index
    %129 = vector.load %arg2[%c5_69, %c1_70, %c0_71, %c0_72] : memref<9x2x8x1xf32, #tpu.memory_space<vmem>>, vector<1x1x8x1xf32>
    %130 = vector.shape_cast %129 : vector<1x1x8x1xf32> to vector<8x1xf32>
    %131 = vector.broadcast %130 : vector<8x1xf32> to vector<8x256xf32>
    %132 = arith.mulf %32, %131 : vector<8x256xf32>
    %133 = arith.addf %128, %132 : vector<8x256xf32>
    %c6_73 = arith.constant 6 : index
    %c1_74 = arith.constant 1 : index
    %c0_75 = arith.constant 0 : index
    %c0_76 = arith.constant 0 : index
    %134 = vector.load %arg2[%c6_73, %c1_74, %c0_75, %c0_76] : memref<9x2x8x1xf32, #tpu.memory_space<vmem>>, vector<1x1x8x1xf32>
    %135 = vector.shape_cast %134 : vector<1x1x8x1xf32> to vector<8x1xf32>
    %136 = vector.broadcast %135 : vector<8x1xf32> to vector<8x256xf32>
    %137 = arith.mulf %44, %136 : vector<8x256xf32>
    %138 = arith.addf %133, %137 : vector<8x256xf32>
    %c7_77 = arith.constant 7 : index
    %c1_78 = arith.constant 1 : index
    %c0_79 = arith.constant 0 : index
    %c0_80 = arith.constant 0 : index
    %139 = vector.load %arg2[%c7_77, %c1_78, %c0_79, %c0_80] : memref<9x2x8x1xf32, #tpu.memory_space<vmem>>, vector<1x1x8x1xf32>
    %140 = vector.shape_cast %139 : vector<1x1x8x1xf32> to vector<8x1xf32>
    %141 = vector.broadcast %140 : vector<8x1xf32> to vector<8x256xf32>
    %142 = arith.mulf %47, %141 : vector<8x256xf32>
    %143 = arith.addf %138, %142 : vector<8x256xf32>
    %c8_81 = arith.constant 8 : index
    %c1_82 = arith.constant 1 : index
    %c0_83 = arith.constant 0 : index
    %c0_84 = arith.constant 0 : index
    %144 = vector.load %arg2[%c8_81, %c1_82, %c0_83, %c0_84] : memref<9x2x8x1xf32, #tpu.memory_space<vmem>>, vector<1x1x8x1xf32>
    %145 = vector.shape_cast %144 : vector<1x1x8x1xf32> to vector<8x1xf32>
    %146 = vector.broadcast %145 : vector<8x1xf32> to vector<8x256xf32>
    %147 = arith.mulf %50, %146 : vector<8x256xf32>
    %148 = arith.addf %143, %147 : vector<8x256xf32>
    %c1_85 = arith.constant 1 : index
    %c0_86 = arith.constant 0 : index
    %c0_87 = arith.constant 0 : index
    %149 = vector.load %arg3[%c1_85, %c0_86, %c0_87] : memref<2x8x1xf32, #tpu.memory_space<vmem>>, vector<1x8x1xf32>
    %150 = vector.shape_cast %149 : vector<1x8x1xf32> to vector<8x1xf32>
    %151 = vector.broadcast %150 : vector<8x1xf32> to vector<8x256xf32>
    %152 = arith.addf %148, %151 : vector<8x256xf32>
    %153 = arith.negf %152 : vector<8x256xf32>
    %154 = math.exp %153 : vector<8x256xf32>
    %cst_88 = arith.constant 1.000000e+00 : f32
    %155 = vector.broadcast %cst_88 : f32 to vector<8x256xf32>
    %156 = arith.addf %155, %154 : vector<8x256xf32>
    %157 = arith.divf %155, %156 : vector<8x256xf32>
    %158 = arith.mulf %152, %157 : vector<8x256xf32>
    %159 = tpu.concatenate %104, %158 in 0 : vector<8x256xf32>, vector<8x256xf32> -> vector<16x256xf32>
    %c0_89 = arith.constant 0 : index
    %c0_90 = arith.constant 0 : index
    %160 = vector.load %arg4[%c0_89, %c0_90] : memref<16x16xbf16, #tpu.memory_space<vmem>>, vector<16x16xbf16>
    %161 = arith.truncf %159 : vector<16x256xf32> to vector<16x256xbf16>
    %cst_91 = arith.constant dense<0.000000e+00> : vector<16x256xf32>
    %162 = tpu.matmul %160, %161, %cst_91 {dimension_numbers = #tpu.dot_dimension_numbers<[1], [0], [0], [1], [0, 0, 1, 1], [], []>} : vector<16x16xbf16>, vector<16x256xbf16>, vector<16x256xf32> -> vector<16x256xf32>
    %c0_92 = arith.constant 0 : index
    %c0_93 = arith.constant 0 : index
    %163 = vector.load %arg5[%c0_92, %c0_93] : memref<16x1xf32, #tpu.memory_space<vmem>>, vector<16x1xf32>
    %164 = vector.broadcast %163 : vector<16x1xf32> to vector<16x256xf32>
    %165 = arith.addf %162, %164 : vector<16x256xf32>
    %166 = arith.negf %165 : vector<16x256xf32>
    %167 = math.exp %166 : vector<16x256xf32>
    %cst_94 = arith.constant 1.000000e+00 : f32
    %168 = vector.broadcast %cst_94 : f32 to vector<16x256xf32>
    %169 = arith.addf %168, %167 : vector<16x256xf32>
    %170 = arith.divf %168, %169 : vector<16x256xf32>
    %171 = arith.mulf %165, %170 : vector<16x256xf32>
    %c1_i32_95 = arith.constant 1 : i32
    %172 = tpu.dynamic_rotate %171 by %c1_i32_95 dim 1 : vector<16x256xf32>, i32 -> vector<16x256xf32>
    %173 = vector.broadcast %9 : vector<1x256xf32> to vector<16x256xf32>
    %174 = arith.mulf %172, %173 : vector<16x256xf32>
    %c255_i32_96 = arith.constant 255 : i32
    %175 = tpu.dynamic_rotate %171 by %c255_i32_96 dim 1 : vector<16x256xf32>, i32 -> vector<16x256xf32>
    %176 = vector.broadcast %14 : vector<1x256xf32> to vector<16x256xf32>
    %177 = arith.mulf %175, %176 : vector<16x256xf32>
    %c16_i32_97 = arith.constant 16 : i32
    %178 = tpu.dynamic_rotate %174 by %c16_i32_97 dim 1 : vector<16x256xf32>, i32 -> vector<16x256xf32>
    %179 = vector.broadcast %19 : vector<1x256xf32> to vector<16x256xf32>
    %180 = arith.mulf %178, %179 : vector<16x256xf32>
    %c16_i32_98 = arith.constant 16 : i32
    %181 = tpu.dynamic_rotate %171 by %c16_i32_98 dim 1 : vector<16x256xf32>, i32 -> vector<16x256xf32>
    %182 = vector.broadcast %19 : vector<1x256xf32> to vector<16x256xf32>
    %183 = arith.mulf %181, %182 : vector<16x256xf32>
    %c16_i32_99 = arith.constant 16 : i32
    %184 = tpu.dynamic_rotate %177 by %c16_i32_99 dim 1 : vector<16x256xf32>, i32 -> vector<16x256xf32>
    %185 = vector.broadcast %19 : vector<1x256xf32> to vector<16x256xf32>
    %186 = arith.mulf %184, %185 : vector<16x256xf32>
    %c240_i32_100 = arith.constant 240 : i32
    %187 = tpu.dynamic_rotate %174 by %c240_i32_100 dim 1 : vector<16x256xf32>, i32 -> vector<16x256xf32>
    %188 = vector.broadcast %24 : vector<1x256xf32> to vector<16x256xf32>
    %189 = arith.mulf %187, %188 : vector<16x256xf32>
    %c240_i32_101 = arith.constant 240 : i32
    %190 = tpu.dynamic_rotate %171 by %c240_i32_101 dim 1 : vector<16x256xf32>, i32 -> vector<16x256xf32>
    %191 = vector.broadcast %24 : vector<1x256xf32> to vector<16x256xf32>
    %192 = arith.mulf %190, %191 : vector<16x256xf32>
    %c240_i32_102 = arith.constant 240 : i32
    %193 = tpu.dynamic_rotate %177 by %c240_i32_102 dim 1 : vector<16x256xf32>, i32 -> vector<16x256xf32>
    %194 = vector.broadcast %24 : vector<1x256xf32> to vector<16x256xf32>
    %195 = arith.mulf %193, %194 : vector<16x256xf32>
    %c0_103 = arith.constant 0 : index
    %c0_104 = arith.constant 0 : index
    %c0_105 = arith.constant 0 : index
    %c0_106 = arith.constant 0 : index
    %196 = vector.load %arg6[%c0_103, %c0_104, %c0_105, %c0_106] : memref<9x2x16x1xf32, #tpu.memory_space<vmem>>, vector<1x1x16x1xf32>
    %197 = vector.shape_cast %196 : vector<1x1x16x1xf32> to vector<16x1xf32>
    %198 = vector.broadcast %197 : vector<16x1xf32> to vector<16x256xf32>
    %199 = arith.mulf %180, %198 : vector<16x256xf32>
    %c1_107 = arith.constant 1 : index
    %c0_108 = arith.constant 0 : index
    %c0_109 = arith.constant 0 : index
    %c0_110 = arith.constant 0 : index
    %200 = vector.load %arg6[%c1_107, %c0_108, %c0_109, %c0_110] : memref<9x2x16x1xf32, #tpu.memory_space<vmem>>, vector<1x1x16x1xf32>
    %201 = vector.shape_cast %200 : vector<1x1x16x1xf32> to vector<16x1xf32>
    %202 = vector.broadcast %201 : vector<16x1xf32> to vector<16x256xf32>
    %203 = arith.mulf %183, %202 : vector<16x256xf32>
    %204 = arith.addf %199, %203 : vector<16x256xf32>
    %c2_111 = arith.constant 2 : index
    %c0_112 = arith.constant 0 : index
    %c0_113 = arith.constant 0 : index
    %c0_114 = arith.constant 0 : index
    %205 = vector.load %arg6[%c2_111, %c0_112, %c0_113, %c0_114] : memref<9x2x16x1xf32, #tpu.memory_space<vmem>>, vector<1x1x16x1xf32>
    %206 = vector.shape_cast %205 : vector<1x1x16x1xf32> to vector<16x1xf32>
    %207 = vector.broadcast %206 : vector<16x1xf32> to vector<16x256xf32>
    %208 = arith.mulf %186, %207 : vector<16x256xf32>
    %209 = arith.addf %204, %208 : vector<16x256xf32>
    %c3_115 = arith.constant 3 : index
    %c0_116 = arith.constant 0 : index
    %c0_117 = arith.constant 0 : index
    %c0_118 = arith.constant 0 : index
    %210 = vector.load %arg6[%c3_115, %c0_116, %c0_117, %c0_118] : memref<9x2x16x1xf32, #tpu.memory_space<vmem>>, vector<1x1x16x1xf32>
    %211 = vector.shape_cast %210 : vector<1x1x16x1xf32> to vector<16x1xf32>
    %212 = vector.broadcast %211 : vector<16x1xf32> to vector<16x256xf32>
    %213 = arith.mulf %174, %212 : vector<16x256xf32>
    %214 = arith.addf %209, %213 : vector<16x256xf32>
    %c4_119 = arith.constant 4 : index
    %c0_120 = arith.constant 0 : index
    %c0_121 = arith.constant 0 : index
    %c0_122 = arith.constant 0 : index
    %215 = vector.load %arg6[%c4_119, %c0_120, %c0_121, %c0_122] : memref<9x2x16x1xf32, #tpu.memory_space<vmem>>, vector<1x1x16x1xf32>
    %216 = vector.shape_cast %215 : vector<1x1x16x1xf32> to vector<16x1xf32>
    %217 = vector.broadcast %216 : vector<16x1xf32> to vector<16x256xf32>
    %218 = arith.mulf %171, %217 : vector<16x256xf32>
    %219 = arith.addf %214, %218 : vector<16x256xf32>
    %c5_123 = arith.constant 5 : index
    %c0_124 = arith.constant 0 : index
    %c0_125 = arith.constant 0 : index
    %c0_126 = arith.constant 0 : index
    %220 = vector.load %arg6[%c5_123, %c0_124, %c0_125, %c0_126] : memref<9x2x16x1xf32, #tpu.memory_space<vmem>>, vector<1x1x16x1xf32>
    %221 = vector.shape_cast %220 : vector<1x1x16x1xf32> to vector<16x1xf32>
    %222 = vector.broadcast %221 : vector<16x1xf32> to vector<16x256xf32>
    %223 = arith.mulf %177, %222 : vector<16x256xf32>
    %224 = arith.addf %219, %223 : vector<16x256xf32>
    %c6_127 = arith.constant 6 : index
    %c0_128 = arith.constant 0 : index
    %c0_129 = arith.constant 0 : index
    %c0_130 = arith.constant 0 : index
    %225 = vector.load %arg6[%c6_127, %c0_128, %c0_129, %c0_130] : memref<9x2x16x1xf32, #tpu.memory_space<vmem>>, vector<1x1x16x1xf32>
    %226 = vector.shape_cast %225 : vector<1x1x16x1xf32> to vector<16x1xf32>
    %227 = vector.broadcast %226 : vector<16x1xf32> to vector<16x256xf32>
    %228 = arith.mulf %189, %227 : vector<16x256xf32>
    %229 = arith.addf %224, %228 : vector<16x256xf32>
    %c7_131 = arith.constant 7 : index
    %c0_132 = arith.constant 0 : index
    %c0_133 = arith.constant 0 : index
    %c0_134 = arith.constant 0 : index
    %230 = vector.load %arg6[%c7_131, %c0_132, %c0_133, %c0_134] : memref<9x2x16x1xf32, #tpu.memory_space<vmem>>, vector<1x1x16x1xf32>
    %231 = vector.shape_cast %230 : vector<1x1x16x1xf32> to vector<16x1xf32>
    %232 = vector.broadcast %231 : vector<16x1xf32> to vector<16x256xf32>
    %233 = arith.mulf %192, %232 : vector<16x256xf32>
    %234 = arith.addf %229, %233 : vector<16x256xf32>
    %c8_135 = arith.constant 8 : index
    %c0_136 = arith.constant 0 : index
    %c0_137 = arith.constant 0 : index
    %c0_138 = arith.constant 0 : index
    %235 = vector.load %arg6[%c8_135, %c0_136, %c0_137, %c0_138] : memref<9x2x16x1xf32, #tpu.memory_space<vmem>>, vector<1x1x16x1xf32>
    %236 = vector.shape_cast %235 : vector<1x1x16x1xf32> to vector<16x1xf32>
    %237 = vector.broadcast %236 : vector<16x1xf32> to vector<16x256xf32>
    %238 = arith.mulf %195, %237 : vector<16x256xf32>
    %239 = arith.addf %234, %238 : vector<16x256xf32>
    %c0_139 = arith.constant 0 : index
    %c0_140 = arith.constant 0 : index
    %c0_141 = arith.constant 0 : index
    %240 = vector.load %arg7[%c0_139, %c0_140, %c0_141] : memref<2x16x1xf32, #tpu.memory_space<vmem>>, vector<1x16x1xf32>
    %241 = vector.shape_cast %240 : vector<1x16x1xf32> to vector<16x1xf32>
    %242 = vector.broadcast %241 : vector<16x1xf32> to vector<16x256xf32>
    %243 = arith.addf %239, %242 : vector<16x256xf32>
    %244 = arith.negf %243 : vector<16x256xf32>
    %245 = math.exp %244 : vector<16x256xf32>
    %cst_142 = arith.constant 1.000000e+00 : f32
    %246 = vector.broadcast %cst_142 : f32 to vector<16x256xf32>
    %247 = arith.addf %246, %245 : vector<16x256xf32>
    %248 = arith.divf %246, %247 : vector<16x256xf32>
    %249 = arith.mulf %243, %248 : vector<16x256xf32>
    %c0_143 = arith.constant 0 : index
    %c1_144 = arith.constant 1 : index
    %c0_145 = arith.constant 0 : index
    %c0_146 = arith.constant 0 : index
    %250 = vector.load %arg6[%c0_143, %c1_144, %c0_145, %c0_146] : memref<9x2x16x1xf32, #tpu.memory_space<vmem>>, vector<1x1x16x1xf32>
    %251 = vector.shape_cast %250 : vector<1x1x16x1xf32> to vector<16x1xf32>
    %252 = vector.broadcast %251 : vector<16x1xf32> to vector<16x256xf32>
    %253 = arith.mulf %180, %252 : vector<16x256xf32>
    %c1_147 = arith.constant 1 : index
    %c1_148 = arith.constant 1 : index
    %c0_149 = arith.constant 0 : index
    %c0_150 = arith.constant 0 : index
    %254 = vector.load %arg6[%c1_147, %c1_148, %c0_149, %c0_150] : memref<9x2x16x1xf32, #tpu.memory_space<vmem>>, vector<1x1x16x1xf32>
    %255 = vector.shape_cast %254 : vector<1x1x16x1xf32> to vector<16x1xf32>
    %256 = vector.broadcast %255 : vector<16x1xf32> to vector<16x256xf32>
    %257 = arith.mulf %183, %256 : vector<16x256xf32>
    %258 = arith.addf %253, %257 : vector<16x256xf32>
    %c2_151 = arith.constant 2 : index
    %c1_152 = arith.constant 1 : index
    %c0_153 = arith.constant 0 : index
    %c0_154 = arith.constant 0 : index
    %259 = vector.load %arg6[%c2_151, %c1_152, %c0_153, %c0_154] : memref<9x2x16x1xf32, #tpu.memory_space<vmem>>, vector<1x1x16x1xf32>
    %260 = vector.shape_cast %259 : vector<1x1x16x1xf32> to vector<16x1xf32>
    %261 = vector.broadcast %260 : vector<16x1xf32> to vector<16x256xf32>
    %262 = arith.mulf %186, %261 : vector<16x256xf32>
    %263 = arith.addf %258, %262 : vector<16x256xf32>
    %c3_155 = arith.constant 3 : index
    %c1_156 = arith.constant 1 : index
    %c0_157 = arith.constant 0 : index
    %c0_158 = arith.constant 0 : index
    %264 = vector.load %arg6[%c3_155, %c1_156, %c0_157, %c0_158] : memref<9x2x16x1xf32, #tpu.memory_space<vmem>>, vector<1x1x16x1xf32>
    %265 = vector.shape_cast %264 : vector<1x1x16x1xf32> to vector<16x1xf32>
    %266 = vector.broadcast %265 : vector<16x1xf32> to vector<16x256xf32>
    %267 = arith.mulf %174, %266 : vector<16x256xf32>
    %268 = arith.addf %263, %267 : vector<16x256xf32>
    %c4_159 = arith.constant 4 : index
    %c1_160 = arith.constant 1 : index
    %c0_161 = arith.constant 0 : index
    %c0_162 = arith.constant 0 : index
    %269 = vector.load %arg6[%c4_159, %c1_160, %c0_161, %c0_162] : memref<9x2x16x1xf32, #tpu.memory_space<vmem>>, vector<1x1x16x1xf32>
    %270 = vector.shape_cast %269 : vector<1x1x16x1xf32> to vector<16x1xf32>
    %271 = vector.broadcast %270 : vector<16x1xf32> to vector<16x256xf32>
    %272 = arith.mulf %171, %271 : vector<16x256xf32>
    %273 = arith.addf %268, %272 : vector<16x256xf32>
    %c5_163 = arith.constant 5 : index
    %c1_164 = arith.constant 1 : index
    %c0_165 = arith.constant 0 : index
    %c0_166 = arith.constant 0 : index
    %274 = vector.load %arg6[%c5_163, %c1_164, %c0_165, %c0_166] : memref<9x2x16x1xf32, #tpu.memory_space<vmem>>, vector<1x1x16x1xf32>
    %275 = vector.shape_cast %274 : vector<1x1x16x1xf32> to vector<16x1xf32>
    %276 = vector.broadcast %275 : vector<16x1xf32> to vector<16x256xf32>
    %277 = arith.mulf %177, %276 : vector<16x256xf32>
    %278 = arith.addf %273, %277 : vector<16x256xf32>
    %c6_167 = arith.constant 6 : index
    %c1_168 = arith.constant 1 : index
    %c0_169 = arith.constant 0 : index
    %c0_170 = arith.constant 0 : index
    %279 = vector.load %arg6[%c6_167, %c1_168, %c0_169, %c0_170] : memref<9x2x16x1xf32, #tpu.memory_space<vmem>>, vector<1x1x16x1xf32>
    %280 = vector.shape_cast %279 : vector<1x1x16x1xf32> to vector<16x1xf32>
    %281 = vector.broadcast %280 : vector<16x1xf32> to vector<16x256xf32>
    %282 = arith.mulf %189, %281 : vector<16x256xf32>
    %283 = arith.addf %278, %282 : vector<16x256xf32>
    %c7_171 = arith.constant 7 : index
    %c1_172 = arith.constant 1 : index
    %c0_173 = arith.constant 0 : index
    %c0_174 = arith.constant 0 : index
    %284 = vector.load %arg6[%c7_171, %c1_172, %c0_173, %c0_174] : memref<9x2x16x1xf32, #tpu.memory_space<vmem>>, vector<1x1x16x1xf32>
    %285 = vector.shape_cast %284 : vector<1x1x16x1xf32> to vector<16x1xf32>
    %286 = vector.broadcast %285 : vector<16x1xf32> to vector<16x256xf32>
    %287 = arith.mulf %192, %286 : vector<16x256xf32>
    %288 = arith.addf %283, %287 : vector<16x256xf32>
    %c8_175 = arith.constant 8 : index
    %c1_176 = arith.constant 1 : index
    %c0_177 = arith.constant 0 : index
    %c0_178 = arith.constant 0 : index
    %289 = vector.load %arg6[%c8_175, %c1_176, %c0_177, %c0_178] : memref<9x2x16x1xf32, #tpu.memory_space<vmem>>, vector<1x1x16x1xf32>
    %290 = vector.shape_cast %289 : vector<1x1x16x1xf32> to vector<16x1xf32>
    %291 = vector.broadcast %290 : vector<16x1xf32> to vector<16x256xf32>
    %292 = arith.mulf %195, %291 : vector<16x256xf32>
    %293 = arith.addf %288, %292 : vector<16x256xf32>
    %c1_179 = arith.constant 1 : index
    %c0_180 = arith.constant 0 : index
    %c0_181 = arith.constant 0 : index
    %294 = vector.load %arg7[%c1_179, %c0_180, %c0_181] : memref<2x16x1xf32, #tpu.memory_space<vmem>>, vector<1x16x1xf32>
    %295 = vector.shape_cast %294 : vector<1x16x1xf32> to vector<16x1xf32>
    %296 = vector.broadcast %295 : vector<16x1xf32> to vector<16x256xf32>
    %297 = arith.addf %293, %296 : vector<16x256xf32>
    %298 = arith.negf %297 : vector<16x256xf32>
    %299 = math.exp %298 : vector<16x256xf32>
    %cst_182 = arith.constant 1.000000e+00 : f32
    %300 = vector.broadcast %cst_182 : f32 to vector<16x256xf32>
    %301 = arith.addf %300, %299 : vector<16x256xf32>
    %302 = arith.divf %300, %301 : vector<16x256xf32>
    %303 = arith.mulf %297, %302 : vector<16x256xf32>
    %304 = tpu.concatenate %249, %303 in 0 : vector<16x256xf32>, vector<16x256xf32> -> vector<32x256xf32>
    %c0_183 = arith.constant 0 : index
    %c0_184 = arith.constant 0 : index
    %305 = vector.load %arg8[%c0_183, %c0_184] : memref<8x32xbf16, #tpu.memory_space<vmem>>, vector<8x32xbf16>
    %306 = arith.truncf %304 : vector<32x256xf32> to vector<32x256xbf16>
    %cst_185 = arith.constant dense<0.000000e+00> : vector<8x256xf32>
    %307 = tpu.matmul %305, %306, %cst_185 {dimension_numbers = #tpu.dot_dimension_numbers<[1], [0], [0], [1], [0, 0, 1, 1], [], []>} : vector<8x32xbf16>, vector<32x256xbf16>, vector<8x256xf32> -> vector<8x256xf32>
    %c0_186 = arith.constant 0 : index
    %c0_187 = arith.constant 0 : index
    %308 = vector.load %arg9[%c0_186, %c0_187] : memref<8x1xf32, #tpu.memory_space<vmem>>, vector<8x1xf32>
    %309 = vector.broadcast %308 : vector<8x1xf32> to vector<8x256xf32>
    %310 = arith.addf %307, %309 : vector<8x256xf32>
    %c0_188 = arith.constant 0 : index
    %c0_189 = arith.constant 0 : index
    %311 = vector.load %arg10[%c0_188, %c0_189] : memref<8x2xf32, #tpu.memory_space<vmem>>, vector<8x2xf32>
    %c0_190 = arith.constant 0 : index
    %c0_191 = arith.constant 0 : index
    %312 = vector.load %arg11[%c0_190, %c0_191] : memref<8x2xf32, #tpu.memory_space<vmem>>, vector<8x2xf32>
    %cst_192 = arith.constant dense<0.000000e+00> : vector<8xf32>
    %313 = vector.multi_reduction <add>, %310, %cst_192 [1] : vector<8x256xf32> to vector<8xf32>
    %314 = vector.shape_cast %313 : vector<8xf32> to vector<8x1xf32>
    %cst_193 = arith.constant 3.906250e-03 : f32
    %315 = vector.broadcast %cst_193 : f32 to vector<8x1xf32>
    %316 = arith.mulf %314, %315 : vector<8x1xf32>
    %317 = vector.broadcast %316 : vector<8x1xf32> to vector<8x2xf32>
    %318 = arith.mulf %311, %317 : vector<8x2xf32>
    %cst_194 = arith.constant dense<0.000000e+00> : vector<2xf32>
    %319 = vector.multi_reduction <add>, %318, %cst_194 [0] : vector<8x2xf32> to vector<2xf32>
    %320 = vector.shape_cast %319 : vector<2xf32> to vector<1x2xf32>
    %321 = arith.negf %320 : vector<1x2xf32>
    %322 = math.exp %321 : vector<1x2xf32>
    %cst_195 = arith.constant 1.000000e+00 : f32
    %323 = vector.broadcast %cst_195 : f32 to vector<1x2xf32>
    %324 = arith.addf %323, %322 : vector<1x2xf32>
    %325 = arith.divf %323, %324 : vector<1x2xf32>
    %326 = arith.mulf %320, %325 : vector<1x2xf32>
    %327 = vector.broadcast %326 : vector<1x2xf32> to vector<8x2xf32>
    %328 = arith.mulf %312, %327 : vector<8x2xf32>
    %cst_196 = arith.constant dense<0.000000e+00> : vector<8xf32>
    %329 = vector.multi_reduction <add>, %328, %cst_196 [1] : vector<8x2xf32> to vector<8xf32>
    %330 = vector.shape_cast %329 : vector<8xf32> to vector<8x1xf32>
    %331 = arith.negf %330 : vector<8x1xf32>
    %332 = math.exp %331 : vector<8x1xf32>
    %cst_197 = arith.constant 1.000000e+00 : f32
    %333 = vector.broadcast %cst_197 : f32 to vector<8x1xf32>
    %334 = arith.addf %333, %332 : vector<8x1xf32>
    %335 = arith.divf %333, %334 : vector<8x1xf32>
    %336 = vector.broadcast %335 : vector<8x1xf32> to vector<8x256xf32>
    %337 = arith.mulf %310, %336 : vector<8x256xf32>
    %338 = arith.addf %26, %337 : vector<8x256xf32>
    %339 = arith.negf %338 : vector<8x256xf32>
    %340 = math.exp %339 : vector<8x256xf32>
    %cst_198 = arith.constant 1.000000e+00 : f32
    %341 = vector.broadcast %cst_198 : f32 to vector<8x256xf32>
    %342 = arith.addf %341, %340 : vector<8x256xf32>
    %343 = arith.divf %341, %342 : vector<8x256xf32>
    %344 = arith.mulf %338, %343 : vector<8x256xf32>
    %c0_199 = arith.constant 0 : index
    %c0_200 = arith.constant 0 : index
    %c0_201 = arith.constant 0 : index
    %345 = vector.load %arg12[%c0_199, %c0_200, %c0_201] : memref<1x8x256xf32, #tpu.memory_space<vmem>>, vector<1x8x256xf32>
    %346 = vector.shape_cast %345 : vector<1x8x256xf32> to vector<8x256xf32>
    %347 = vector.shape_cast %344 : vector<8x256xf32> to vector<1x8x256xf32>
    tpu.vector_store %arg12[%c0_199, %c0_200, %c0_201], %347 {strides = array<i32>} : memref<1x8x256xf32, #tpu.memory_space<vmem>>, vector<1x8x256xf32>,
    return
  }
  func.func @transform_0(%arg0: i32) -> (i32, i32, i32) {
    %c0_i32 = arith.constant 0 : i32
    %c0_i32_0 = arith.constant 0 : i32
    %c0_i32_1 = arith.constant 0 : i32
    return %arg0, %c0_i32, %c0_i32_0 : i32, i32, i32
  }
  func.func @transform_1(%arg0: i32) -> (i32, i32, i32, i32) {
    %c0_i32 = arith.constant 0 : i32
    %c0_i32_0 = arith.constant 0 : i32
    %c0_i32_1 = arith.constant 0 : i32
    %c0_i32_2 = arith.constant 0 : i32
    %c0_i32_3 = arith.constant 0 : i32
    return %c0_i32, %c0_i32_0, %c0_i32_1, %c0_i32_2 : i32, i32, i32, i32
  }
  func.func @transform_2(%arg0: i32) -> (i32, i32, i32) {
    %c0_i32 = arith.constant 0 : i32
    %c0_i32_0 = arith.constant 0 : i32
    %c0_i32_1 = arith.constant 0 : i32
    %c0_i32_2 = arith.constant 0 : i32
    return %c0_i32, %c0_i32_0, %c0_i32_1 : i32, i32, i32
  }
  func.func @transform_3(%arg0: i32) -> (i32, i32) {
    %c0_i32 = arith.constant 0 : i32
    %c0_i32_0 = arith.constant 0 : i32
    %c0_i32_1 = arith.constant 0 : i32
    return %c0_i32, %c0_i32_0 : i32, i32
  }
  func.func @transform_4(%arg0: i32) -> (i32, i32) {
    %c0_i32 = arith.constant 0 : i32
    %c0_i32_0 = arith.constant 0 : i32
    %c0_i32_1 = arith.constant 0 : i32
    return %c0_i32, %c0_i32_0 : i32, i32
  }
  func.func @transform_5(%arg0: i32) -> (i32, i32, i32, i32) {
    %c0_i32 = arith.constant 0 : i32
    %c0_i32_0 = arith.constant 0 : i32
    %c0_i32_1 = arith.constant 0 : i32
    %c0_i32_2 = arith.constant 0 : i32
    %c0_i32_3 = arith.constant 0 : i32
    return %c0_i32, %c0_i32_0, %c0_i32_1, %c0_i32_2 : i32, i32, i32, i32
  }
  func.func @transform_6(%arg0: i32) -> (i32, i32, i32) {
    %c0_i32 = arith.constant 0 : i32
    %c0_i32_0 = arith.constant 0 : i32
    %c0_i32_1 = arith.constant 0 : i32
    %c0_i32_2 = arith.constant 0 : i32
    return %c0_i32, %c0_i32_0, %c0_i32_1 : i32, i32, i32
  }
  func.func @transform_7(%arg0: i32) -> (i32, i32) {
    %c0_i32 = arith.constant 0 : i32
    %c0_i32_0 = arith.constant 0 : i32
    %c0_i32_1 = arith.constant 0 : i32
    return %c0_i32, %c0_i32_0 : i32, i32
  }
  func.func @transform_8(%arg0: i32) -> (i32, i32) {
    %c0_i32 = arith.constant 0 : i32
    %c0_i32_0 = arith.constant 0 : i32
    %c0_i32_1 = arith.constant 0 : i32
    return %c0_i32, %c0_i32_0 : i32, i32
  }
  func.func @transform_9(%arg0: i32) -> (i32, i32) {
    %c0_i32 = arith.constant 0 : i32
    %c0_i32_0 = arith.constant 0 : i32
    %c0_i32_1 = arith.constant 0 : i32
    return %c0_i32, %c0_i32_0 : i32, i32
  }
  func.func @transform_10(%arg0: i32) -> (i32, i32) {
    %c0_i32 = arith.constant 0 : i32
    %c0_i32_0 = arith.constant 0 : i32
    %c0_i32_1 = arith.constant 0 : i32
    return %c0_i32, %c0_i32_0 : i32, i32
  }
  func.func @transform_11(%arg0: i32) -> (i32, i32, i32) {
    %c0_i32 = arith.constant 0 : i32
    %c0_i32_0 = arith.constant 0 : i32
    %c0_i32_1 = arith.constant 0 : i32
    return %arg0, %c0_i32, %c0_i32_0 : i32, i32, i32
  }
}

</mosaic_0001>

<llo_original>
// kernel: vargnet_block_fwd.1
$region0: #{vargnet_block_fwd.1}
  #allocation0 [shape = 'u32[]', space=smem, size = 0x4, offset = 0x4, fixed_abs, tag = 'smem constant byte address 0x4 - core index']
  #allocation1 [shape = 'u32[144,128]{1,0:T(1,128)}', space=vmem, size = 0x12000, scoped, tag = 'internal scratch']
  %s0 = inlined_call_operand.vmem [shape: f32[2,8,256], index: 0, kind: input, shape index: {}]
  %s1 = inlined_call_operand.vmem [shape: f32[9,2,8,1], index: 1, kind: input, shape index: {}]
  %s2 = inlined_call_operand.vmem [shape: f32[2,8,1], index: 2, kind: input, shape index: {}]
  %s3 = inlined_call_operand.vmem [shape: bf16[16,16], index: 3, kind: input, shape index: {}]
  %s4 = inlined_call_operand.vmem [shape: f32[16,1], index: 4, kind: input, shape index: {}]
  %s5 = inlined_call_operand.vmem [shape: f32[9,2,16,1], index: 5, kind: input, shape index: {}]
  %s6 = inlined_call_operand.vmem [shape: f32[2,16,1], index: 6, kind: input, shape index: {}]
  %s7 = inlined_call_operand.vmem [shape: bf16[8,32], index: 7, kind: input, shape index: {}]
  %s8 = inlined_call_operand.vmem [shape: f32[8,1], index: 8, kind: input, shape index: {}]
  %s9 = inlined_call_operand.vmem [shape: f32[8,2], index: 9, kind: input, shape index: {}]
  %s10 = inlined_call_operand.vmem [shape: f32[8,2], index: 10, kind: input, shape index: {}]
  %s11 = inlined_call_operand.vmem [shape: f32[2,8,256], index: 11, kind: output, shape index: {}]
  %s12 = sld [smem:[#allocation0]]
  $region77: #{vargnet_block_fwd.1} parent=0
    _
  %s14 = ssub.s32 1, %s12
  %s15 = scalar_select 0, %s14, %s12
  loop: start=0, step=1, limit=4
  $region2: #{vargnet_block_fwd.1} parent=0 // loop_pre_header
    _
  $region3: #{vargnet_block_fwd.1} parent=0 // loop_header
    %s17 = sphi 0, %s21
    %p18 = scmp.ge.s32.totalorder %s17, 4
    %s27 = sphi 0, %s29
    %s30 = sphi 0, %s27
    %s31 = sphi 0, %s30
    %s47 = sphi 0, %s31
    %s51 = sphi 0, %s51
    %s53 = sphi 0, %s51
    %s54 = sphi 0, %s53
    %s68 = sphi 0, %s54
    %s72 = sphi 0, %s72
    %s74 = sphi 0, %s72
    %s75 = sphi 0, %s74
    %s89 = sphi 0, %s75
    %s93 = sphi 0, %s93
    %s95 = sphi 0, %s93
    %s96 = sphi 0, %s95
    %s110 = sphi 0, %s96
    %s114 = sphi 0, %s114
    %s116 = sphi 0, %s114
    %s117 = sphi 0, %s116
    %s131 = sphi 0, %s117
    %s135 = sphi 0, %s135
    %s137 = sphi 0, %s135
    %s138 = sphi 0, %s137
    %s152 = sphi 0, %s138
    %s156 = sphi 0, %s156
    %s158 = sphi 0, %s156
    %s159 = sphi 0, %s158
    %s173 = sphi 0, %s159
    %s177 = sphi 0, %s177
    %s179 = sphi 0, %s177
    %s180 = sphi 0, %s179
    %s194 = sphi 0, %s180
    %s198 = sphi 0, %s198
    %s200 = sphi 0, %s198
    %s201 = sphi 0, %s200
    %s215 = sphi 0, %s201
    %s219 = sphi 0, %s219
    %s221 = sphi 0, %s219
    %s222 = sphi 0, %s221
    %s236 = sphi 0, %s222
    %s240 = sphi 0, %s240
    %s242 = sphi 0, %s240
    %s243 = sphi 0, %s242
    %s257 = sphi 0, %s243
    %s263 = sphi 0, %s265
    %s266 = sphi 0, %s263
    %s267 = sphi 0, %s266
    %s283 = sphi 0, %s267
  $region4: #{vargnet_block_fwd.1} parent=0 // loop_header_branch
    %20 = sbr.rel (%p18) target = $region8
  $region5: #{vargnet_block_fwd.1} parent=0 // loop_body
    %s22 = ssub.s32 %s17, 1
    %s23 = ssub.s32 %s17, 2
    %s24 = sadd.s32 %s17, 1
    %s25 = ssub.s32 %s17, %s24
    %p26 = scmp.eq.s32.totalorder %s25, 0
    %s28 = sadd.s32 %s27, 1
    %s29 = scalar_select %p26, %s27, %s28
    %p32 = pneg %p26
    %p33 = scmp.eq.s32.totalorder %s17, 1
    %p34 = por %p32, %p33
    %p35 = scmp.ne.s32.totalorder %s27, %s30
    %p36 = scmp.eq.s32.totalorder %s17, 0
    %p37 = por %p35, %p36
    %p38 = scmp.ne.s32.totalorder %s27, %s30
    %p39 = scmp.eq.s32.totalorder %s22, 1
    %p40 = por %p38, %p39
    %p41 = scmp.ne.s32.totalorder %s30, %s31
    %p42 = scmp.eq.s32.totalorder %s22, 0
    %p43 = por %p41, %p42
    %p44 = scmp.ne.s32.totalorder %s30, %s31
    %p45 = scmp.eq.s32.totalorder %s23, 1
    %p46 = por %p44, %p45
    %p48 = scmp.ne.s32.totalorder %s31, %s47
    %p49 = scmp.eq.s32.totalorder %s23, 0
    %p50 = por %p48, %p49
    %s52 = sadd.s32 %s51, 1
    %p55 = scmp.eq.s32.totalorder %s17, 1
    %p56 = scmp.ne.s32.totalorder %s51, %s53
    %p57 = scmp.eq.s32.totalorder %s17, 0
    %p58 = por %p56, %p57
    %p59 = scmp.ne.s32.totalorder %s51, %s53
    %p60 = scmp.eq.s32.totalorder %s22, 1
    %p61 = por %p59, %p60
    %p62 = scmp.ne.s32.totalorder %s53, %s54
    %p63 = scmp.eq.s32.totalorder %s22, 0
    %p64 = por %p62, %p63
    %p65 = scmp.ne.s32.totalorder %s53, %s54
    %p66 = scmp.eq.s32.totalorder %s23, 1
    %p67 = por %p65, %p66
    %p69 = scmp.ne.s32.totalorder %s54, %s68
    %p70 = scmp.eq.s32.totalorder %s23, 0
    %p71 = por %p69, %p70
    %s73 = sadd.s32 %s72, 1
    %p76 = scmp.eq.s32.totalorder %s17, 1
    %p77 = scmp.ne.s32.totalorder %s72, %s74
    %p78 = scmp.eq.s32.totalorder %s17, 0
    %p79 = por %p77, %p78
    %p80 = scmp.ne.s32.totalorder %s72, %s74
    %p81 = scmp.eq.s32.totalorder %s22, 1
    %p82 = por %p80, %p81
    %p83 = scmp.ne.s32.totalorder %s74, %s75
    %p84 = scmp.eq.s32.totalorder %s22, 0
    %p85 = por %p83, %p84
    %p86 = scmp.ne.s32.totalorder %s74, %s75
    %p87 = scmp.eq.s32.totalorder %s23, 1
    %p88 = por %p86, %p87
    %p90 = scmp.ne.s32.totalorder %s75, %s89
    %p91 = scmp.eq.s32.totalorder %s23, 0
    %p92 = por %p90, %p91
    %s94 = sadd.s32 %s93, 1
    %p97 = scmp.eq.s32.totalorder %s17, 1
    %p98 = scmp.ne.s32.totalorder %s93, %s95
    %p99 = scmp.eq.s32.totalorder %s17, 0
    %p100 = por %p98, %p99
    %p101 = scmp.ne.s32.totalorder %s93, %s95
    %p102 = scmp.eq.s32.totalorder %s22, 1
    %p103 = por %p101, %p102
    %p104 = scmp.ne.s32.totalorder %s95, %s96
    %p105 = scmp.eq.s32.totalorder %s22, 0
    %p106 = por %p104, %p105
    %p107 = scmp.ne.s32.totalorder %s95, %s96
    %p108 = scmp.eq.s32.totalorder %s23, 1
    %p109 = por %p107, %p108
    %p111 = scmp.ne.s32.totalorder %s96, %s110
    %p112 = scmp.eq.s32.totalorder %s23, 0
    %p113 = por %p111, %p112
    %s115 = sadd.s32 %s114, 1
    %p118 = scmp.eq.s32.totalorder %s17, 1
    %p119 = scmp.ne.s32.totalorder %s114, %s116
    %p120 = scmp.eq.s32.totalorder %s17, 0
    %p121 = por %p119, %p120
    %p122 = scmp.ne.s32.totalorder %s114, %s116
    %p123 = scmp.eq.s32.totalorder %s22, 1
    %p124 = por %p122, %p123
    %p125 = scmp.ne.s32.totalorder %s116, %s117
    %p126 = scmp.eq.s32.totalorder %s22, 0
    %p127 = por %p125, %p126
    %p128 = scmp.ne.s32.totalorder %s116, %s117
    %p129 = scmp.eq.s32.totalorder %s23, 1
    %p130 = por %p128, %p129
    %p132 = scmp.ne.s32.totalorder %s117, %s131
    %p133 = scmp.eq.s32.totalorder %s23, 0
    %p134 = por %p132, %p133
    %s136 = sadd.s32 %s135, 1
    %p139 = scmp.eq.s32.totalorder %s17, 1
    %p140 = scmp.ne.s32.totalorder %s135, %s137
    %p141 = scmp.eq.s32.totalorder %s17, 0
    %p142 = por %p140, %p141
    %p143 = scmp.ne.s32.totalorder %s135, %s137
    %p144 = scmp.eq.s32.totalorder %s22, 1
    %p145 = por %p143, %p144
    %p146 = scmp.ne.s32.totalorder %s137, %s138
    %p147 = scmp.eq.s32.totalorder %s22, 0
    %p148 = por %p146, %p147
    %p149 = scmp.ne.s32.totalorder %s137, %s138
    %p150 = scmp.eq.s32.totalorder %s23, 1
    %p151 = por %p149, %p150
    %p153 = scmp.ne.s32.totalorder %s138, %s152
    %p154 = scmp.eq.s32.totalorder %s23, 0
    %p155 = por %p153, %p154
    %s157 = sadd.s32 %s156, 1
    %p160 = scmp.eq.s32.totalorder %s17, 1
    %p161 = scmp.ne.s32.totalorder %s156, %s158
    %p162 = scmp.eq.s32.totalorder %s17, 0
    %p163 = por %p161, %p162
    %p164 = scmp.ne.s32.totalorder %s156, %s158
    %p165 = scmp.eq.s32.totalorder %s22, 1
    %p166 = por %p164, %p165
    %p167 = scmp.ne.s32.totalorder %s158, %s159
    %p168 = scmp.eq.s32.totalorder %s22, 0
    %p169 = por %p167, %p168
    %p170 = scmp.ne.s32.totalorder %s158, %s159
    %p171 = scmp.eq.s32.totalorder %s23, 1
    %p172 = por %p170, %p171
    %p174 = scmp.ne.s32.totalorder %s159, %s173
    %p175 = scmp.eq.s32.totalorder %s23, 0
    %p176 = por %p174, %p175
    %s178 = sadd.s32 %s177, 1
    %p181 = scmp.eq.s32.totalorder %s17, 1
    %p182 = scmp.ne.s32.totalorder %s177, %s179
    %p183 = scmp.eq.s32.totalorder %s17, 0
    %p184 = por %p182, %p183
    %p185 = scmp.ne.s32.totalorder %s177, %s179
    %p186 = scmp.eq.s32.totalorder %s22, 1
    %p187 = por %p185, %p186
    %p188 = scmp.ne.s32.totalorder %s179, %s180
    %p189 = scmp.eq.s32.totalorder %s22, 0
    %p190 = por %p188, %p189
    %p191 = scmp.ne.s32.totalorder %s179, %s180
    %p192 = scmp.eq.s32.totalorder %s23, 1
    %p193 = por %p191, %p192
    %p195 = scmp.ne.s32.totalorder %s180, %s194
    %p196 = scmp.eq.s32.totalorder %s23, 0
    %p197 = por %p195, %p196
    %s199 = sadd.s32 %s198, 1
    %p202 = scmp.eq.s32.totalorder %s17, 1
    %p203 = scmp.ne.s32.totalorder %s198, %s200
    %p204 = scmp.eq.s32.totalorder %s17, 0
    %p205 = por %p203, %p204
    %p206 = scmp.ne.s32.totalorder %s198, %s200
    %p207 = scmp.eq.s32.totalorder %s22, 1
    %p208 = por %p206, %p207
    %p209 = scmp.ne.s32.totalorder %s200, %s201
    %p210 = scmp.eq.s32.totalorder %s22, 0
    %p211 = por %p209, %p210
    %p212 = scmp.ne.s32.totalorder %s200, %s201
    %p213 = scmp.eq.s32.totalorder %s23, 1
    %p214 = por %p212, %p213
    %p216 = scmp.ne.s32.totalorder %s201, %s215
    %p217 = scmp.eq.s32.totalorder %s23, 0
    %p218 = por %p216, %p217
    %s220 = sadd.s32 %s219, 1
    %p223 = scmp.eq.s32.totalorder %s17, 1
    %p224 = scmp.ne.s32.totalorder %s219, %s221
    %p225 = scmp.eq.s32.totalorder %s17, 0
    %p226 = por %p224, %p225
    %p227 = scmp.ne.s32.totalorder %s219, %s221
    %p228 = scmp.eq.s32.totalorder %s22, 1
    %p229 = por %p227, %p228
    %p230 = scmp.ne.s32.totalorder %s221, %s222
    %p231 = scmp.eq.s32.totalorder %s22, 0
    %p232 = por %p230, %p231
    %p233 = scmp.ne.s32.totalorder %s221, %s222
    %p234 = scmp.eq.s32.totalorder %s23, 1
    %p235 = por %p233, %p234
    %p237 = scmp.ne.s32.totalorder %s222, %s236
    %p238 = scmp.eq.s32.totalorder %s23, 0
    %p239 = por %p237, %p238
    %s241 = sadd.s32 %s240, 1
    %p244 = scmp.eq.s32.totalorder %s17, 1
    %p245 = scmp.ne.s32.totalorder %s240, %s242
    %p246 = scmp.eq.s32.totalorder %s17, 0
    %p247 = por %p245, %p246
    %p248 = scmp.ne.s32.totalorder %s240, %s242
    %p249 = scmp.eq.s32.totalorder %s22, 1
    %p250 = por %p248, %p249
    %p251 = scmp.ne.s32.totalorder %s242, %s243
    %p252 = scmp.eq.s32.totalorder %s22, 0
    %p253 = por %p251, %p252
    %p254 = scmp.ne.s32.totalorder %s242, %s243
    %p255 = scmp.eq.s32.totalorder %s23, 1
    %p256 = por %p254, %p255
    %p258 = scmp.ne.s32.totalorder %s243, %s257
    %p259 = scmp.eq.s32.totalorder %s23, 0
    %p260 = por %p258, %p259
    %s261 = ssub.s32 %s17, %s24
    %p262 = scmp.eq.s32.totalorder %s261, 0
    %s264 = sadd.s32 %s263, 1
    %s265 = scalar_select %p262, %s263, %s264
    %p268 = pneg %p262
    %p269 = scmp.eq.s32.totalorder %s17, 1
    %p270 = por %p268, %p269
    %p271 = scmp.ne.s32.totalorder %s263, %s266
    %p272 = scmp.eq.s32.totalorder %s17, 0
    %p273 = por %p271, %p272
    %p274 = scmp.ne.s32.totalorder %s263, %s266
    %p275 = scmp.eq.s32.totalorder %s22, 1
    %p276 = por %p274, %p275
    %p277 = scmp.ne.s32.totalorder %s266, %s267
    %p278 = scmp.eq.s32.totalorder %s22, 0
    %p279 = por %p277, %p278
    %p280 = scmp.ne.s32.totalorder %s266, %s267
    %p281 = scmp.eq.s32.totalorder %s23, 1
    %p282 = por %p280, %p281
    %p284 = scmp.ne.s32.totalorder %s267, %s283
    %p285 = scmp.eq.s32.totalorder %s23, 0
    %p286 = por %p284, %p285
    %p287 = scmp.le.s32.totalorder 1, %s17
    %p288 = scmp.lt.s32.totalorder %s17, 3
    %p289 = pnand %p287, %p288
    %p290 = pneg %p289
    // Predicated region
    $region9: #{vargnet_block_fwd.1} parent=5 // pred_check
      _
    $region10: #{vargnet_block_fwd.1} parent=5 // pred_check_branch
      %292 = sbr.rel (%p289) target = $region12
    $region11: #{vargnet_block_fwd.1} parent=5 // pred_region
      %s293 = ssub.s32 %s17, 1
      // Predicated region
      $region13: #{vargnet_block_fwd.1} parent=11 // pred_check
        %p294 = pneg %p64
      $region14: #{vargnet_block_fwd.1} parent=11 // pred_check_branch
        %296 = sbr.rel (%p294) target = $region16
      $region15: #{vargnet_block_fwd.1} parent=11 // pred_region
        _
      $region16: #{vargnet_block_fwd.1} parent=11 // pred_fallthru
        _
      // Predicated region
      $region17: #{vargnet_block_fwd.1} parent=11 // pred_check
        %p297 = pneg %p85
      $region18: #{vargnet_block_fwd.1} parent=11 // pred_check_branch
        %299 = sbr.rel (%p297) target = $region20
      $region19: #{vargnet_block_fwd.1} parent=11 // pred_region
        _
      $region20: #{vargnet_block_fwd.1} parent=11 // pred_fallthru
        _
      // Predicated region
      $region21: #{vargnet_block_fwd.1} parent=11 // pred_check
        %p300 = pneg %p106
      $region22: #{vargnet_block_fwd.1} parent=11 // pred_check_branch
        %302 = sbr.rel (%p300) target = $region24
      $region23: #{vargnet_block_fwd.1} parent=11 // pred_region
        _
      $region24: #{vargnet_block_fwd.1} parent=11 // pred_fallthru
        _
      // Predicated region
      $region25: #{vargnet_block_fwd.1} parent=11 // pred_check
        %p303 = pneg %p127
      $region26: #{vargnet_block_fwd.1} parent=11 // pred_check_branch
        %305 = sbr.rel (%p303) target = $region28
      $region27: #{vargnet_block_fwd.1} parent=11 // pred_region
        _
      $region28: #{vargnet_block_fwd.1} parent=11 // pred_fallthru
        _
      // Predicated region
      $region29: #{vargnet_block_fwd.1} parent=11 // pred_check
        %p306 = pneg %p148
      $region30: #{vargnet_block_fwd.1} parent=11 // pred_check_branch
        %308 = sbr.rel (%p306) target = $region32
      $region31: #{vargnet_block_fwd.1} parent=11 // pred_region
        _
      $region32: #{vargnet_block_fwd.1} parent=11 // pred_fallthru
        _
      // Predicated region
      $region33: #{vargnet_block_fwd.1} parent=11 // pred_check
        %p309 = pneg %p169
      $region34: #{vargnet_block_fwd.1} parent=11 // pred_check_branch
        %311 = sbr.rel (%p309) target = $region36
      $region35: #{vargnet_block_fwd.1} parent=11 // pred_region
        _
      $region36: #{vargnet_block_fwd.1} parent=11 // pred_fallthru
        _
      // Predicated region
      $region37: #{vargnet_block_fwd.1} parent=11 // pred_check
        %p312 = pneg %p190
      $region38: #{vargnet_block_fwd.1} parent=11 // pred_check_branch
        %314 = sbr.rel (%p312) target = $region40
      $region39: #{vargnet_block_fwd.1} parent=11 // pred_region
        _
      $region40: #{vargnet_block_fwd.1} parent=11 // pred_fallthru
        _
      // Predicated region
      $region41: #{vargnet_block_fwd.1} parent=11 // pred_check
        %p315 = pneg %p211
      $region42: #{vargnet_block_fwd.1} parent=11 // pred_check_branch
        %317 = sbr.rel (%p315) target = $region44
      $region43: #{vargnet_block_fwd.1} parent=11 // pred_region
        _
      $region44: #{vargnet_block_fwd.1} parent=11 // pred_fallthru
        _
      // Predicated region
      $region45: #{vargnet_block_fwd.1} parent=11 // pred_check
        %p318 = pneg %p232
      $region46: #{vargnet_block_fwd.1} parent=11 // pred_check_branch
        %320 = sbr.rel (%p318) target = $region48
      $region47: #{vargnet_block_fwd.1} parent=11 // pred_region
        _
      $region48: #{vargnet_block_fwd.1} parent=11 // pred_fallthru
        _
      // Predicated region
      $region49: #{vargnet_block_fwd.1} parent=11 // pred_check
        %p321 = pneg %p253
      $region50: #{vargnet_block_fwd.1} parent=11 // pred_check_branch
        %323 = sbr.rel (%p321) target = $region52
      $region51: #{vargnet_block_fwd.1} parent=11 // pred_region
        _
      $region52: #{vargnet_block_fwd.1} parent=11 // pred_fallthru
        _
    $region12: #{vargnet_block_fwd.1} parent=5 // pred_fallthru
      _
    %p324 = scmp.lt.s32.totalorder %s17, 2
    // Predicated region
    $region53: #{vargnet_block_fwd.1} parent=5 // pred_check
      %p325 = pneg %p324
    $region54: #{vargnet_block_fwd.1} parent=5 // pred_check_branch
      %327 = sbr.rel (%p325) target = $region56
    $region55: #{vargnet_block_fwd.1} parent=5 // pred_region
      // Predicated region
      $region57: #{vargnet_block_fwd.1} parent=55 // pred_check
        %p328 = pneg %p37
      $region58: #{vargnet_block_fwd.1} parent=55 // pred_check_branch
        %330 = sbr.rel (%p328) target = $region60
      $region59: #{vargnet_block_fwd.1} parent=55 // pred_region
        %p331 = scmp.lt.s32.totalorder %s17, 1
        %s332 = scalar_select %p331, %s17, 1
        %s333 = smul.addr %s332, 2
        %s334 = smul.addr %s333, 8
        %s335 = scalar_lea.vmem %s0, %s334
      $region60: #{vargnet_block_fwd.1} parent=55 // pred_fallthru
        _
    $region56: #{vargnet_block_fwd.1} parent=5 // pred_fallthru
      _
    %p336 = scmp.le.s32.totalorder 1, %s17
    %p337 = scmp.lt.s32.totalorder %s17, 3
    %p338 = pnand %p336, %p337
    %p339 = pneg %p338
    // Predicated region
    $region61: #{vargnet_block_fwd.1} parent=5 // pred_check
      _
    $region62: #{vargnet_block_fwd.1} parent=5 // pred_check_branch
      %341 = sbr.rel (%p338) target = $region64
    $region63: #{vargnet_block_fwd.1} parent=5 // pred_region
      %s342 = ssub.s32 %s17, 1
      %p343 = scmp.lt.s32.totalorder %s22, 1
      %s344 = scalar_select %p343, %s22, 1
      %s345 = smul.addr %s344, 2
      %s346 = smul.addr %s345, 8
      %s347 = scalar_lea.vmem %s0, %s346
      %p348 = pneg %p43
      %p349 = pneg %p40
      %p350 = pneg %p64
      %p351 = pneg %p61
      %p352 = pneg %p85
      %p353 = pneg %p82
      %p354 = pneg %p106
      %p355 = pneg %p103
      %p356 = pneg %p127
      %p357 = pneg %p124
      %p358 = pneg %p148
      %p359 = pneg %p145
      %p360 = pneg %p169
      %p361 = pneg %p166
      %p362 = pneg %p190
      %p363 = pneg %p187
      %p364 = pneg %p211
      %p365 = pneg %p208
      %p366 = pneg %p232
      %p367 = pneg %p229
      %p368 = pneg %p253
      %p369 = pneg %p250
      %p370 = pneg %p279
      %p371 = pneg %p276
      %p372 = scmp.lt.s32.totalorder %s22, 1
      %s373 = scalar_select %p372, %s22, 1
      %s374 = smul.addr %s373, 2
      %s375 = smul.addr %s374, 8
      %s376 = scalar_lea.vmem %s11, %s375
      %p377 = scmp.lt.s32.totalorder %s22, 1
      %s378 = scalar_select %p377, %s22, 1
      %s379 = smul.addr %s378, 2
      %s380 = smul.addr %s379, 8
      %s381 = scalar_lea.vmem %s0, %s380
      %p382 = scmp.lt.s32.totalorder %s22, 1
      %s383 = scalar_select %p382, %s22, 1
      %s384 = smul.addr %s383, 2
      %s385 = smul.addr %s384, 8
      %s386 = scalar_lea.vmem %s11, %s385
      %v388 = vlaneseq
      %v389 = vand.u32 %v388, 127
      %v390 = vadd.s32 %v389, 128
      %v391 = vand.u32 %v389, 15
      %v392 = vand.u32 %v390, 15
      %v393 = vand.u32 %v389, 255
      %v394 = vand.u32 %v390, 255
      %vm395 = vcmp.ge.s32.totalorder %v391, 1
      %vm396 = vcmp.ge.s32.totalorder %v392, 1
      %v397 = vsel %vm395, 1.0, 0.0
      %v398 = vsel %vm396, 1.0, 0.0
      %vm399 = vcmp.le.s32.totalorder %v391, 14
      %vm400 = vcmp.le.s32.totalorder %v392, 14
      %v401 = vsel %vm399, 1.0, 0.0
      %v402 = vsel %vm400, 1.0, 0.0
      %vm403 = vcmp.ge.s32.totalorder %v393, 16
      %vm404 = vcmp.ge.s32.totalorder %v394, 16
      %v405 = vsel %vm403, 1.0, 0.0
      %v406 = vsel %vm404, 1.0, 0.0
      %vm407 = vcmp.lt.s32.totalorder %v393, 240
      %vm408 = vcmp.lt.s32.totalorder %v394, 240
      %v409 = vsel %vm407, 1.0, 0.0
      %v410 = vsel %vm408, 1.0, 0.0
      %v411 = vld [vmem:[%s381] sm:$0xff]
      %v412 = vld [vmem:[%s381 + $0x8] sm:$0xff]
      %413 = vrot.lane.b32.xlu0 %v411, 1
      %v414 = vpop.permute.xlu0 %413
      %415 = vrot.lane.b32.xlu0 %v412, 1
      %v416 = vpop.permute.xlu0 %415
      %vm417 = vcmp.lt.s32.totalorder %v389, 1
      %v418 = vsel %vm417, %v414, %v416
      %v419 = vsel %vm417, %v416, %v414
      %v420 = vmul.f32 %v419, %v397
      %v421 = vmul.f32 %v418, %v398
      %422 = vrot.lane.b32.xlu0 %v411, 127
      %v423 = vpop.permute.xlu0 %422
      %424 = vrot.lane.b32.xlu0 %v412, 127
      %v425 = vpop.permute.xlu0 %424
      %vm426 = vcmp.lt.s32.totalorder %v389, 127
      %v427 = vsel %vm426, %v423, %v425
      %v428 = vsel %vm426, %v425, %v423
      %v429 = vmul.f32 %v427, %v401
      %v430 = vmul.f32 %v428, %v402
      %431 = vrot.lane.b32.xlu0 %v420, 16
      %v432 = vpop.permute.xlu0 %431
      %433 = vrot.lane.b32.xlu0 %v421, 16
      %v434 = vpop.permute.xlu0 %433
      %vm435 = vcmp.lt.s32.totalorder %v389, 16
      %v436 = vsel %vm435, %v432, %v434
      %v437 = vsel %vm435, %v434, %v432
      %v438 = vmul.f32 %v437, %v405
      %v439 = vmul.f32 %v436, %v406
      %440 = vrot.lane.b32.xlu0 %v411, 16
      %v441 = vpop.permute.xlu0 %440
      %442 = vrot.lane.b32.xlu0 %v412, 16
      %v443 = vpop.permute.xlu0 %442
      %v444 = vsel %vm435, %v441, %v443
      %v445 = vsel %vm435, %v443, %v441
      %v446 = vmul.f32 %v445, %v405
      %v447 = vmul.f32 %v444, %v406
      %448 = vrot.lane.b32.xlu0 %v429, 16
      %v449 = vpop.permute.xlu0 %448
      %450 = vrot.lane.b32.xlu0 %v430, 16
      %v451 = vpop.permute.xlu0 %450
      %v452 = vsel %vm435, %v449, %v451
      %v453 = vsel %vm435, %v451, %v449
      %v454 = vmul.f32 %v453, %v405
      %v455 = vmul.f32 %v452, %v406
      %456 = vrot.lane.b32.xlu0 %v420, 112
      %v457 = vpop.permute.xlu0 %456
      %458 = vrot.lane.b32.xlu0 %v421, 112
      %v459 = vpop.permute.xlu0 %458
      %vm460 = vcmp.lt.s32.totalorder %v389, 112
      %v461 = vsel %vm460, %v457, %v459
      %v462 = vsel %vm460, %v459, %v457
      %v463 = vmul.f32 %v461, %v409
      %v464 = vmul.f32 %v462, %v410
      %465 = vrot.lane.b32.xlu0 %v411, 112
      %v466 = vpop.permute.xlu0 %465
      %467 = vrot.lane.b32.xlu0 %v412, 112
      %v468 = vpop.permute.xlu0 %467
      %v469 = vsel %vm460, %v466, %v468
      %v470 = vsel %vm460, %v468, %v466
      %v471 = vmul.f32 %v469, %v409
      %v472 = vmul.f32 %v470, %v410
      %473 = vrot.lane.b32.xlu0 %v429, 112
      %v474 = vpop.permute.xlu0 %473
      %475 = vrot.lane.b32.xlu0 %v430, 112
      %v476 = vpop.permute.xlu0 %475
      %v477 = vsel %vm460, %v474, %v476
      %v478 = vsel %vm460, %v476, %v474
      %v479 = vmul.f32 %v477, %v409
      %v480 = vmul.f32 %v478, %v410
      %v481 = vld [vmem:[%s1] sm:$0xff]
      %483 = vset.pattern.permute.xlu0 0
      %484 = vperm.xlu0 %483, %v481
      %v485 = vpop.permute.xlu0 %484
      %v487 = vmul.f32 %v438, %v485
      %v488 = vmul.f32 %v439, %v485
      %s489 = scalar_lea.vmem %s1, 16
      %v490 = vld [vmem:[%s489] sm:$0xff]
      %492 = vset.pattern.permute.xlu0 0
      %493 = vperm.xlu0 %492, %v490
      %v494 = vpop.permute.xlu0 %493
      %v496 = vmul.f32 %v446, %v494
      %v497 = vmul.f32 %v447, %v494
      %v498 = vadd.f32 %v487, %v496
      %v499 = vadd.f32 %v488, %v497
      %s500 = scalar_lea.vmem %s1, 32
      %v501 = vld [vmem:[%s500] sm:$0xff]
      %503 = vset.pattern.permute.xlu0 0
      %504 = vperm.xlu0 %503, %v501
      %v505 = vpop.permute.xlu0 %504
      %v507 = vmul.f32 %v454, %v505
      %v508 = vmul.f32 %v455, %v505
      %v509 = vadd.f32 %v498, %v507
      %v510 = vadd.f32 %v499, %v508
      %s511 = scalar_lea.vmem %s1, 48
      %v512 = vld [vmem:[%s511] sm:$0xff]
      %514 = vset.pattern.permute.xlu0 0
      %515 = vperm.xlu0 %514, %v512
      %v516 = vpop.permute.xlu0 %515
      %v518 = vmul.f32 %v420, %v516
      %v519 = vmul.f32 %v421, %v516
      %v520 = vadd.f32 %v509, %v518
      %v521 = vadd.f32 %v510, %v519
      %s522 = scalar_lea.vmem %s1, 64
      %v523 = vld [vmem:[%s522] sm:$0xff]
      %525 = vset.pattern.permute.xlu0 0
      %526 = vperm.xlu0 %525, %v523
      %v527 = vpop.permute.xlu0 %526
      %v529 = vmul.f32 %v411, %v527
      %v530 = vmul.f32 %v412, %v527
      %v531 = vadd.f32 %v520, %v529
      %v532 = vadd.f32 %v521, %v530
      %s533 = scalar_lea.vmem %s1, 80
      %v534 = vld [vmem:[%s533] sm:$0xff]
      %536 = vset.pattern.permute.xlu0 0
      %537 = vperm.xlu0 %536, %v534
      %v538 = vpop.permute.xlu0 %537
      %v540 = vmul.f32 %v429, %v538
      %v541 = vmul.f32 %v430, %v538
      %v542 = vadd.f32 %v531, %v540
      %v543 = vadd.f32 %v532, %v541
      %s544 = scalar_lea.vmem %s1, 96
      %v545 = vld [vmem:[%s544] sm:$0xff]
      %547 = vset.pattern.permute.xlu0 0
      %548 = vperm.xlu0 %547, %v545
      %v549 = vpop.permute.xlu0 %548
      %v551 = vmul.f32 %v463, %v549
      %v552 = vmul.f32 %v464, %v549
      %v553 = vadd.f32 %v542, %v551
      %v554 = vadd.f32 %v543, %v552
      %s555 = scalar_lea.vmem %s1, 112
      %v556 = vld [vmem:[%s555] sm:$0xff]
      %558 = vset.pattern.permute.xlu0 0
      %559 = vperm.xlu0 %558, %v556
      %v560 = vpop.permute.xlu0 %559
      %v562 = vmul.f32 %v471, %v560
      %v563 = vmul.f32 %v472, %v560
      %v564 = vadd.f32 %v553, %v562
      %v565 = vadd.f32 %v554, %v563
      %s566 = scalar_lea.vmem %s1, 128
      %v567 = vld [vmem:[%s566] sm:$0xff]
      %569 = vset.pattern.permute.xlu0 0
      %570 = vperm.xlu0 %569, %v567
      %v571 = vpop.permute.xlu0 %570
      %v573 = vmul.f32 %v479, %v571
      %v574 = vmul.f32 %v480, %v571
      %v575 = vadd.f32 %v564, %v573
      %v576 = vadd.f32 %v565, %v574
      %v577 = vld [vmem:[%s2] sm:$0xff]
      %579 = vset.pattern.permute.xlu0 0
      %580 = vperm.xlu0 %579, %v577
      %v581 = vpop.permute.xlu0 %580
      %v583 = vadd.f32 %v575, %v581
      %v584 = vadd.f32 %v576, %v581
      %v585 = vxor.u32 %v583, 2147483648
      %v586 = vxor.u32 %v584, 2147483648
      %v587 = vmul.f32 %v585, 1.442695
      %v588 = vpow.pop %v587
      %v589 = vmul.f32 %v586, 1.442695
      %v590 = vpow.pop %v589
      %v591 = vadd.f32 %v588, 1.0
      %v592 = vadd.f32 %v590, 1.0
      %v593 = vrcp.pop %v591
      %v594 = vmul.f32 1.0, %v593
      %v595 = vrcp.pop %v592
      %v596 = vmul.f32 1.0, %v595
      %v597 = vmul.f32 %v583, %v594
      %v598 = vmul.f32 %v584, %v596
      %s599 = scalar_lea.vmem %s1, 8
      %v600 = vld [vmem:[%s599] sm:$0xff]
      %602 = vset.pattern.permute.xlu0 0
      %603 = vperm.xlu0 %602, %v600
      %v604 = vpop.permute.xlu0 %603
      %v606 = vmul.f32 %v438, %v604
      %v607 = vmul.f32 %v439, %v604
      %s608 = scalar_lea.vmem %s1, 24
      %v609 = vld [vmem:[%s608] sm:$0xff]
      %611 = vset.pattern.permute.xlu0 0
      %612 = vperm.xlu0 %611, %v609
      %v613 = vpop.permute.xlu0 %612
      %v615 = vmul.f32 %v446, %v613
      %v616 = vmul.f32 %v447, %v613
      %v617 = vadd.f32 %v606, %v615
      %v618 = vadd.f32 %v607, %v616
      %s619 = scalar_lea.vmem %s1, 40
      %v620 = vld [vmem:[%s619] sm:$0xff]
      %622 = vset.pattern.permute.xlu0 0
      %623 = vperm.xlu0 %622, %v620
      %v624 = vpop.permute.xlu0 %623
      %v626 = vmul.f32 %v454, %v624
      %v627 = vmul.f32 %v455, %v624
      %v628 = vadd.f32 %v617, %v626
      %v629 = vadd.f32 %v618, %v627
      %s630 = scalar_lea.vmem %s1, 56
      %v631 = vld [vmem:[%s630] sm:$0xff]
      %633 = vset.pattern.permute.xlu0 0
      %634 = vperm.xlu0 %633, %v631
      %v635 = vpop.permute.xlu0 %634
      %v637 = vmul.f32 %v420, %v635
      %v638 = vmul.f32 %v421, %v635
      %v639 = vadd.f32 %v628, %v637
      %v640 = vadd.f32 %v629, %v638
      %s641 = scalar_lea.vmem %s1, 72
      %v642 = vld [vmem:[%s641] sm:$0xff]
      %644 = vset.pattern.permute.xlu0 0
      %645 = vperm.xlu0 %644, %v642
      %v646 = vpop.permute.xlu0 %645
      %v648 = vmul.f32 %v411, %v646
      %v649 = vmul.f32 %v412, %v646
      %v650 = vadd.f32 %v639, %v648
      %v651 = vadd.f32 %v640, %v649
      %s652 = scalar_lea.vmem %s1, 88
      %v653 = vld [vmem:[%s652] sm:$0xff]
      %655 = vset.pattern.permute.xlu0 0
      %656 = vperm.xlu0 %655, %v653
      %v657 = vpop.permute.xlu0 %656
      %v659 = vmul.f32 %v429, %v657
      %v660 = vmul.f32 %v430, %v657
      %v661 = vadd.f32 %v650, %v659
      %v662 = vadd.f32 %v651, %v660
      %s663 = scalar_lea.vmem %s1, 104
      %v664 = vld [vmem:[%s663] sm:$0xff]
      %666 = vset.pattern.permute.xlu0 0
      %667 = vperm.xlu0 %666, %v664
      %v668 = vpop.permute.xlu0 %667
      %v670 = vmul.f32 %v463, %v668
      %v671 = vmul.f32 %v464, %v668
      %v672 = vadd.f32 %v661, %v670
      %v673 = vadd.f32 %v662, %v671
      %s674 = scalar_lea.vmem %s1, 120
      %v675 = vld [vmem:[%s674] sm:$0xff]
      %677 = vset.pattern.permute.xlu0 0
      %678 = vperm.xlu0 %677, %v675
      %v679 = vpop.permute.xlu0 %678
      %v681 = vmul.f32 %v471, %v679
      %v682 = vmul.f32 %v472, %v679
      %v683 = vadd.f32 %v672, %v681
      %v684 = vadd.f32 %v673, %v682
      %s685 = scalar_lea.vmem %s1, 136
      %v686 = vld [vmem:[%s685] sm:$0xff]
      %688 = vset.pattern.permute.xlu0 0
      %689 = vperm.xlu0 %688, %v686
      %v690 = vpop.permute.xlu0 %689
      %v692 = vmul.f32 %v479, %v690
      %v693 = vmul.f32 %v480, %v690
      %v694 = vadd.f32 %v683, %v692
      %v695 = vadd.f32 %v684, %v693
      %s696 = scalar_lea.vmem %s2, 8
      %v697 = vld [vmem:[%s696] sm:$0xff]
      %699 = vset.pattern.permute.xlu0 0
      %700 = vperm.xlu0 %699, %v697
      %v701 = vpop.permute.xlu0 %700
      %v703 = vadd.f32 %v694, %v701
      %v704 = vadd.f32 %v695, %v701
      %v705 = vxor.u32 %v703, 2147483648
      %v706 = vxor.u32 %v704, 2147483648
      %v707 = vmul.f32 %v705, 1.442695
      %v708 = vpow.pop %v707
      %v709 = vmul.f32 %v706, 1.442695
      %v710 = vpow.pop %v709
      %v711 = vadd.f32 %v708, 1.0
      %v712 = vadd.f32 %v710, 1.0
      %v713 = vrcp.pop %v711
      %v714 = vmul.f32 1.0, %v713
      %v715 = vrcp.pop %v712
      %v716 = vmul.f32 1.0, %v715
      %v717 = vmul.f32 %v703, %v714
      %v718 = vmul.f32 %v704, %v716
      %v719 = vld [vmem:[%s3] sm:$0xf]
      %v720 = vld [vmem:[%s3 + $0x4] sm:$0xf]
      %v721 = vpack.c.bf16 %v717, %v597
      %v722 = vpack.c.bf16 %v718, %v598
      %v723 = vld [vmem:[%s4] sm:$0xff]
      %v724 = vld [vmem:[%s4 + $0x8] sm:$0xff]
      %726 = vset.pattern.permute.xlu0 0
      %727 = vperm.xlu0 %726, %v723
      %v728 = vpop.permute.xlu0 %727
      %731 = vset.pattern.permute.xlu0 0
      %732 = vperm.xlu0 %731, %v724
      %v733 = vpop.permute.xlu0 %732
      %v737 = vunpack.c.l.b16 %v719
      %v738 = vunpack.c.l.b16 %v720
      %v739 = vpack.c.b16 %v738, %v737
      %vm740 = vcmask 130048
      %v742 = vsel %vm740, %v739, 0
      %744 = vmatprep.subr.bf16.mxu0 0
      %745 = vmatpush1.bf16.msra.mxu0 0
      %746 = vmatprep.subr.bf16.mxu0 0
      %747 = vmatpush1.bf16.msra.mxu0 0
      %748 = vmatprep.subr.bf16.mxu0 0
      %749 = vmatpush1.bf16.msra.mxu0 0
      %750 = vmatprep.subr.bf16.mxu0 0
      %751 = vmatpush1.bf16.msra.mxu0 0
      %752 = vmatprep.subr.bf16.mxu0 0
      %753 = vmatpush1.bf16.msra.mxu0 0
      %754 = vmatprep.subr.bf16.mxu0 0
      %755 = vmatpush1.bf16.msra.mxu0 0
      %756 = vmatprep.subr.bf16.mxu0 0
      %757 = vmatpush1.bf16.msra.mxu0 0
      %758 = vmatprep.subr.bf16.mxu0 %v722
      %759 = vmatpush1.bf16.msra.mxu0 %v721
      %760 = vmatprep.subr.bf16.mxu0 0
      %761 = vmatpush2.bf16.msra.mxu0 0
      %762 = vmatprep.subr.bf16.mxu0 0
      %763 = vmatpush2.bf16.msra.mxu0 0
      %764 = vmatprep.subr.bf16.mxu0 0
      %765 = vmatpush2.bf16.msra.mxu0 0
      %766 = vmatprep.subr.bf16.mxu0 0
      %767 = vmatpush2.bf16.msra.mxu0 0
      %768 = vmatprep.subr.bf16.mxu0 0
      %769 = vmatpush2.bf16.msra.mxu0 0
      %770 = vmatprep.subr.bf16.mxu0 0
      %771 = vmatpush2.bf16.msra.mxu0 0
      %772 = vmatprep.subr.bf16.mxu0 0
      %773 = vmatpush2.bf16.msra.mxu0 0
      %774 = vmatprep.subr.bf16.mxu0 0
      %775 = vmatpush2.bf16.msra.mxu0 0
      %776 = vmatprep.mubr.bf16.mxu0 0
      %777 = vmatmul.mubr.bf16.gmra.mxu0 %v742
      %v778 = vpop.f32.mrf.mxu0
      %v779 = vadd.f32 %v728, %v778
      %v780 = vpop.f32.mrf.mxu0
      %v781 = vadd.f32 %v728, %v780
      %v782 = vpop.f32.mrf.mxu0
      %v783 = vadd.f32 %v733, %v782
      %v784 = vpop.f32.mrf.mxu0
      %v785 = vadd.f32 %v733, %v784
      %786 = vdwg.mxu0
      %v787 = vxor.u32 %v779, 2147483648
      %v788 = vxor.u32 %v781, 2147483648
      %v789 = vxor.u32 %v783, 2147483648
      %v790 = vxor.u32 %v785, 2147483648
      %v791 = vmul.f32 %v787, 1.442695
      %v792 = vpow.pop %v791
      %v793 = vmul.f32 %v788, 1.442695
      %v794 = vpow.pop %v793
      %v795 = vmul.f32 %v789, 1.442695
      %v796 = vpow.pop %v795
      %v797 = vmul.f32 %v790, 1.442695
      %v798 = vpow.pop %v797
      %v799 = vadd.f32 %v792, 1.0
      %v800 = vadd.f32 %v794, 1.0
      %v801 = vadd.f32 %v796, 1.0
      %v802 = vadd.f32 %v798, 1.0
      %v803 = vrcp.pop %v799
      %v804 = vmul.f32 1.0, %v803
      %v805 = vrcp.pop %v800
      %v806 = vmul.f32 1.0, %v805
      %v807 = vrcp.pop %v801
      %v808 = vmul.f32 1.0, %v807
      %v809 = vrcp.pop %v802
      %v810 = vmul.f32 1.0, %v809
      %v811 = vmul.f32 %v779, %v804
      %v812 = vmul.f32 %v781, %v806
      %v813 = vmul.f32 %v783, %v808
      %v814 = vmul.f32 %v785, %v810
      %815 = vrot.lane.b32.xlu0 %v811, 1
      %v816 = vpop.permute.xlu0 %815
      %817 = vrot.lane.b32.xlu0 %v813, 1
      %v818 = vpop.permute.xlu0 %817
      %819 = vrot.lane.b32.xlu0 %v812, 1
      %v820 = vpop.permute.xlu0 %819
      %821 = vrot.lane.b32.xlu0 %v814, 1
      %v822 = vpop.permute.xlu0 %821
      %v823 = vsel %vm417, %v816, %v820
      %v824 = vsel %vm417, %v818, %v822
      %v825 = vsel %vm417, %v820, %v816
      %v826 = vsel %vm417, %v822, %v818
      %v827 = vmul.f32 %v825, %v397
      %v828 = vmul.f32 %v823, %v398
      %v829 = vmul.f32 %v826, %v397
      %v830 = vmul.f32 %v824, %v398
      %831 = vrot.lane.b32.xlu0 %v811, 127
      %v832 = vpop.permute.xlu0 %831
      %833 = vrot.lane.b32.xlu0 %v813, 127
      %v834 = vpop.permute.xlu0 %833
      %835 = vrot.lane.b32.xlu0 %v812, 127
      %v836 = vpop.permute.xlu0 %835
      %837 = vrot.lane.b32.xlu0 %v814, 127
      %v838 = vpop.permute.xlu0 %837
      %v839 = vsel %vm426, %v832, %v836
      %v840 = vsel %vm426, %v834, %v838
      %v841 = vsel %vm426, %v836, %v832
      %v842 = vsel %vm426, %v838, %v834
      %v843 = vmul.f32 %v839, %v401
      %v844 = vmul.f32 %v841, %v402
      %v845 = vmul.f32 %v840, %v401
      %v846 = vmul.f32 %v842, %v402
      %847 = vrot.lane.b32.xlu0 %v827, 16
      %v848 = vpop.permute.xlu0 %847
      %849 = vrot.lane.b32.xlu0 %v829, 16
      %v850 = vpop.permute.xlu0 %849
      %851 = vrot.lane.b32.xlu0 %v828, 16
      %v852 = vpop.permute.xlu0 %851
      %853 = vrot.lane.b32.xlu0 %v830, 16
      %v854 = vpop.permute.xlu0 %853
      %v855 = vsel %vm435, %v848, %v852
      %v856 = vsel %vm435, %v850, %v854
      %v857 = vsel %vm435, %v852, %v848
      %v858 = vsel %vm435, %v854, %v850
      %v859 = vmul.f32 %v857, %v405
      %v860 = vmul.f32 %v855, %v406
      %v861 = vmul.f32 %v858, %v405
      %v862 = vmul.f32 %v856, %v406
      %863 = vrot.lane.b32.xlu0 %v811, 16
      %v864 = vpop.permute.xlu0 %863
      %865 = vrot.lane.b32.xlu0 %v813, 16
      %v866 = vpop.permute.xlu0 %865
      %867 = vrot.lane.b32.xlu0 %v812, 16
      %v868 = vpop.permute.xlu0 %867
      %869 = vrot.lane.b32.xlu0 %v814, 16
      %v870 = vpop.permute.xlu0 %869
      %v871 = vsel %vm435, %v864, %v868
      %v872 = vsel %vm435, %v866, %v870
      %v873 = vsel %vm435, %v868, %v864
      %v874 = vsel %vm435, %v870, %v866
      %v875 = vmul.f32 %v873, %v405
      %v876 = vmul.f32 %v871, %v406
      %v877 = vmul.f32 %v874, %v405
      %v878 = vmul.f32 %v872, %v406
      %879 = vrot.lane.b32.xlu0 %v843, 16
      %v880 = vpop.permute.xlu0 %879
      %881 = vrot.lane.b32.xlu0 %v845, 16
      %v882 = vpop.permute.xlu0 %881
      %883 = vrot.lane.b32.xlu0 %v844, 16
      %v884 = vpop.permute.xlu0 %883
      %885 = vrot.lane.b32.xlu0 %v846, 16
      %v886 = vpop.permute.xlu0 %885
      %v887 = vsel %vm435, %v880, %v884
      %v888 = vsel %vm435, %v882, %v886
      %v889 = vsel %vm435, %v884, %v880
      %v890 = vsel %vm435, %v886, %v882
      %v891 = vmul.f32 %v889, %v405
      %v892 = vmul.f32 %v887, %v406
      %v893 = vmul.f32 %v890, %v405
      %v894 = vmul.f32 %v888, %v406
      %895 = vrot.lane.b32.xlu0 %v827, 112
      %v896 = vpop.permute.xlu0 %895
      %897 = vrot.lane.b32.xlu0 %v829, 112
      %v898 = vpop.permute.xlu0 %897
      %899 = vrot.lane.b32.xlu0 %v828, 112
      %v900 = vpop.permute.xlu0 %899
      %901 = vrot.lane.b32.xlu0 %v830, 112
      %v902 = vpop.permute.xlu0 %901
      %v903 = vsel %vm460, %v896, %v900
      %v904 = vsel %vm460, %v898, %v902
      %v905 = vsel %vm460, %v900, %v896
      %v906 = vsel %vm460, %v902, %v898
      %v907 = vmul.f32 %v903, %v409
      %v908 = vmul.f32 %v905, %v410
      %v909 = vmul.f32 %v904, %v409
      %v910 = vmul.f32 %v906, %v410
      %911 = vrot.lane.b32.xlu0 %v811, 112
      %v912 = vpop.permute.xlu0 %911
      %913 = vrot.lane.b32.xlu0 %v813, 112
      %v914 = vpop.permute.xlu0 %913
      %915 = vrot.lane.b32.xlu0 %v812, 112
      %v916 = vpop.permute.xlu0 %915
      %917 = vrot.lane.b32.xlu0 %v814, 112
      %v918 = vpop.permute.xlu0 %917
      %v919 = vsel %vm460, %v912, %v916
      %v920 = vsel %vm460, %v914, %v918
      %v921 = vsel %vm460, %v916, %v912
      %v922 = vsel %vm460, %v918, %v914
      %v923 = vmul.f32 %v919, %v409
      %v924 = vmul.f32 %v921, %v410
      %v925 = vmul.f32 %v920, %v409
      %v926 = vmul.f32 %v922, %v410
      %927 = vrot.lane.b32.xlu0 %v843, 112
      %v928 = vpop.permute.xlu0 %927
      %929 = vrot.lane.b32.xlu0 %v845, 112
      %v930 = vpop.permute.xlu0 %929
      %931 = vrot.lane.b32.xlu0 %v844, 112
      %v932 = vpop.permute.xlu0 %931
      %933 = vrot.lane.b32.xlu0 %v846, 112
      %v934 = vpop.permute.xlu0 %933
      %v935 = vsel %vm460, %v928, %v932
      %v936 = vsel %vm460, %v930, %v934
      %v937 = vsel %vm460, %v932, %v928
      %v938 = vsel %vm460, %v934, %v930
      %v939 = vmul.f32 %v935, %v409
      %v940 = vmul.f32 %v937, %v410
      %v941 = vmul.f32 %v936, %v409
      %v942 = vmul.f32 %v938, %v410
      %v943 = vld [vmem:[%s5] sm:$0xff]
      %v944 = vld [vmem:[%s5 + $0x8] sm:$0xff]
      %946 = vset.pattern.permute.xlu0 0
      %947 = vperm.xlu0 %946, %v943
      %v948 = vpop.permute.xlu0 %947
      %951 = vset.pattern.permute.xlu0 0
      %952 = vperm.xlu0 %951, %v944
      %v953 = vpop.permute.xlu0 %952
      %v955 = vmul.f32 %v859, %v948
      %v956 = vmul.f32 %v860, %v948
      %v957 = vmul.f32 %v861, %v953
      %v958 = vmul.f32 %v862, %v953
      %s959 = scalar_lea.vmem %s5, 32
      %v960 = vld [vmem:[%s959] sm:$0xff]
      %v961 = vld [vmem:[%s959 + $0x8] sm:$0xff]
      %963 = vset.pattern.permute.xlu0 0
      %964 = vperm.xlu0 %963, %v960
      %v965 = vpop.permute.xlu0 %964
      %968 = vset.pattern.permute.xlu0 0
      %969 = vperm.xlu0 %968, %v961
      %v970 = vpop.permute.xlu0 %969
      %v972 = vmul.f32 %v875, %v965
      %v973 = vmul.f32 %v876, %v965
      %v974 = vmul.f32 %v877, %v970
      %v975 = vmul.f32 %v878, %v970
      %v976 = vadd.f32 %v955, %v972
      %v977 = vadd.f32 %v956, %v973
      %v978 = vadd.f32 %v957, %v974
      %v979 = vadd.f32 %v958, %v975
      %s980 = scalar_lea.vmem %s5, 64
      %v981 = vld [vmem:[%s980] sm:$0xff]
      %v982 = vld [vmem:[%s980 + $0x8] sm:$0xff]
      %984 = vset.pattern.permute.xlu0 0
      %985 = vperm.xlu0 %984, %v981
      %v986 = vpop.permute.xlu0 %985
      %989 = vset.pattern.permute.xlu0 0
      %990 = vperm.xlu0 %989, %v982
      %v991 = vpop.permute.xlu0 %990
      %v993 = vmul.f32 %v891, %v986
      %v994 = vmul.f32 %v892, %v986
      %v995 = vmul.f32 %v893, %v991
      %v996 = vmul.f32 %v894, %v991
      %v997 = vadd.f32 %v976, %v993
      %v998 = vadd.f32 %v977, %v994
      %v999 = vadd.f32 %v978, %v995
      %v1000 = vadd.f32 %v979, %v996
      %s1001 = scalar_lea.vmem %s5, 96
      %v1002 = vld [vmem:[%s1001] sm:$0xff]
      %v1003 = vld [vmem:[%s1001 + $0x8] sm:$0xff]
      %1005 = vset.pattern.permute.xlu0 0
      %1006 = vperm.xlu0 %1005, %v1002
      %v1007 = vpop.permute.xlu0 %1006
      %1010 = vset.pattern.permute.xlu0 0
      %1011 = vperm.xlu0 %1010, %v1003
      %v1012 = vpop.permute.xlu0 %1011
      %v1014 = vmul.f32 %v827, %v1007
      %v1015 = vmul.f32 %v828, %v1007
      %v1016 = vmul.f32 %v829, %v1012
      %v1017 = vmul.f32 %v830, %v1012
      %v1018 = vadd.f32 %v997, %v1014
      %v1019 = vadd.f32 %v998, %v1015
      %v1020 = vadd.f32 %v999, %v1016
      %v1021 = vadd.f32 %v1000, %v1017
      %s1022 = scalar_lea.vmem %s5, 128
      %v1023 = vld [vmem:[%s1022] sm:$0xff]
      %v1024 = vld [vmem:[%s1022 + $0x8] sm:$0xff]
      %1026 = vset.pattern.permute.xlu0 0
      %1027 = vperm.xlu0 %1026, %v1023
      %v1028 = vpop.permute.xlu0 %1027
      %1031 = vset.pattern.permute.xlu0 0
      %1032 = vperm.xlu0 %1031, %v1024
      %v1033 = vpop.permute.xlu0 %1032
      %v1035 = vmul.f32 %v811, %v1028
      %v1036 = vmul.f32 %v812, %v1028
      %v1037 = vmul.f32 %v813, %v1033
      %v1038 = vmul.f32 %v814, %v1033
      %v1039 = vadd.f32 %v1018, %v1035
      %v1040 = vadd.f32 %v1019, %v1036
      %v1041 = vadd.f32 %v1020, %v1037
      %v1042 = vadd.f32 %v1021, %v1038
      %s1043 = scalar_lea.vmem %s5, 160
      %v1044 = vld [vmem:[%s1043] sm:$0xff]
      %v1045 = vld [vmem:[%s1043 + $0x8] sm:$0xff]
      %1047 = vset.pattern.permute.xlu0 0
      %1048 = vperm.xlu0 %1047, %v1044
      %v1049 = vpop.permute.xlu0 %1048
      %1052 = vset.pattern.permute.xlu0 0
      %1053 = vperm.xlu0 %1052, %v1045
      %v1054 = vpop.permute.xlu0 %1053
      %v1056 = vmul.f32 %v843, %v1049
      %v1057 = vmul.f32 %v844, %v1049
      %v1058 = vmul.f32 %v845, %v1054
      %v1059 = vmul.f32 %v846, %v1054
      %v1060 = vadd.f32 %v1039, %v1056
      %v1061 = vadd.f32 %v1040, %v1057
      %v1062 = vadd.f32 %v1041, %v1058
      %v1063 = vadd.f32 %v1042, %v1059
      %s1064 = scalar_lea.vmem %s5, 192
      %v1065 = vld [vmem:[%s1064] sm:$0xff]
      %v1066 = vld [vmem:[%s1064 + $0x8] sm:$0xff]
      %1068 = vset.pattern.permute.xlu0 0
      %1069 = vperm.xlu0 %1068, %v1065
      %v1070 = vpop.permute.xlu0 %1069
      %1073 = vset.pattern.permute.xlu0 0
      %1074 = vperm.xlu0 %1073, %v1066
      %v1075 = vpop.permute.xlu0 %1074
      %v1077 = vmul.f32 %v907, %v1070
      %v1078 = vmul.f32 %v908, %v1070
      %v1079 = vmul.f32 %v909, %v1075
      %v1080 = vmul.f32 %v910, %v1075
      %v1081 = vadd.f32 %v1060, %v1077
      %v1082 = vadd.f32 %v1061, %v1078
      %v1083 = vadd.f32 %v1062, %v1079
      %v1084 = vadd.f32 %v1063, %v1080
      %s1085 = scalar_lea.vmem %s5, 224
      %v1086 = vld [vmem:[%s1085] sm:$0xff]
      %v1087 = vld [vmem:[%s1085 + $0x8] sm:$0xff]
      %1089 = vset.pattern.permute.xlu0 0
      %1090 = vperm.xlu0 %1089, %v1086
      %v1091 = vpop.permute.xlu0 %1090
      %1094 = vset.pattern.permute.xlu0 0
      %1095 = vperm.xlu0 %1094, %v1087
      %v1096 = vpop.permute.xlu0 %1095
      %v1098 = vmul.f32 %v923, %v1091
      %v1099 = vmul.f32 %v924, %v1091
      %v1100 = vmul.f32 %v925, %v1096
      %v1101 = vmul.f32 %v926, %v1096
      %v1102 = vadd.f32 %v1081, %v1098
      %v1103 = vadd.f32 %v1082, %v1099
      %v1104 = vadd.f32 %v1083, %v1100
      %v1105 = vadd.f32 %v1084, %v1101
      %s1106 = scalar_lea.vmem %s5, 256
      %v1107 = vld [vmem:[%s1106] sm:$0xff]
      %v1108 = vld [vmem:[%s1106 + $0x8] sm:$0xff]
      %1110 = vset.pattern.permute.xlu0 0
      %1111 = vperm.xlu0 %1110, %v1107
      %v1112 = vpop.permute.xlu0 %1111
      %1115 = vset.pattern.permute.xlu0 0
      %1116 = vperm.xlu0 %1115, %v1108
      %v1117 = vpop.permute.xlu0 %1116
      %v1119 = vmul.f32 %v939, %v1112
      %v1120 = vmul.f32 %v940, %v1112
      %v1121 = vmul.f32 %v941, %v1117
      %v1122 = vmul.f32 %v942, %v1117
      %v1123 = vadd.f32 %v1102, %v1119
      %v1124 = vadd.f32 %v1103, %v1120
      %v1125 = vadd.f32 %v1104, %v1121
      %v1126 = vadd.f32 %v1105, %v1122
      %v1127 = vld [vmem:[%s6] sm:$0xff]
      %v1128 = vld [vmem:[%s6 + $0x8] sm:$0xff]
      %1130 = vset.pattern.permute.xlu0 0
      %1131 = vperm.xlu0 %1130, %v1127
      %v1132 = vpop.permute.xlu0 %1131
      %1135 = vset.pattern.permute.xlu0 0
      %1136 = vperm.xlu0 %1135, %v1128
      %v1137 = vpop.permute.xlu0 %1136
      %v1139 = vadd.f32 %v1123, %v1132
      %v1140 = vadd.f32 %v1124, %v1132
      %v1141 = vadd.f32 %v1125, %v1137
      %v1142 = vadd.f32 %v1126, %v1137
      %v1143 = vxor.u32 %v1139, 2147483648
      %v1144 = vxor.u32 %v1140, 2147483648
      %v1145 = vxor.u32 %v1141, 2147483648
      %v1146 = vxor.u32 %v1142, 2147483648
      %v1147 = vmul.f32 %v1143, 1.442695
      %v1148 = vpow.pop %v1147
      %v1149 = vmul.f32 %v1144, 1.442695
      %v1150 = vpow.pop %v1149
      %v1151 = vmul.f32 %v1145, 1.442695
      %v1152 = vpow.pop %v1151
      %v1153 = vmul.f32 %v1146, 1.442695
      %v1154 = vpow.pop %v1153
      %v1155 = vadd.f32 %v1148, 1.0
      %v1156 = vadd.f32 %v1150, 1.0
      %v1157 = vadd.f32 %v1152, 1.0
      %v1158 = vadd.f32 %v1154, 1.0
      %v1159 = vrcp.pop %v1155
      %v1160 = vmul.f32 1.0, %v1159
      %v1161 = vrcp.pop %v1156
      %v1162 = vmul.f32 1.0, %v1161
      %v1163 = vrcp.pop %v1157
      %v1164 = vmul.f32 1.0, %v1163
      %v1165 = vrcp.pop %v1158
      %v1166 = vmul.f32 1.0, %v1165
      %v1167 = vmul.f32 %v1139, %v1160
      %v1168 = vmul.f32 %v1140, %v1162
      %v1169 = vmul.f32 %v1141, %v1164
      %v1170 = vmul.f32 %v1142, %v1166
      %s1171 = scalar_lea.vmem %s5, 16
      %v1172 = vld [vmem:[%s1171] sm:$0xff]
      %v1173 = vld [vmem:[%s1171 + $0x8] sm:$0xff]
      %1175 = vset.pattern.permute.xlu0 0
      %1176 = vperm.xlu0 %1175, %v1172
      %v1177 = vpop.permute.xlu0 %1176
      %1180 = vset.pattern.permute.xlu0 0
      %1181 = vperm.xlu0 %1180, %v1173
      %v1182 = vpop.permute.xlu0 %1181
      %v1184 = vmul.f32 %v859, %v1177
      %v1185 = vmul.f32 %v860, %v1177
      %v1186 = vmul.f32 %v861, %v1182
      %v1187 = vmul.f32 %v862, %v1182
      %s1188 = scalar_lea.vmem %s5, 48
      %v1189 = vld [vmem:[%s1188] sm:$0xff]
      %v1190 = vld [vmem:[%s1188 + $0x8] sm:$0xff]
      %1192 = vset.pattern.permute.xlu0 0
      %1193 = vperm.xlu0 %1192, %v1189
      %v1194 = vpop.permute.xlu0 %1193
      %1197 = vset.pattern.permute.xlu0 0
      %1198 = vperm.xlu0 %1197, %v1190
      %v1199 = vpop.permute.xlu0 %1198
      %v1201 = vmul.f32 %v875, %v1194
      %v1202 = vmul.f32 %v876, %v1194
      %v1203 = vmul.f32 %v877, %v1199
      %v1204 = vmul.f32 %v878, %v1199
      %v1205 = vadd.f32 %v1184, %v1201
      %v1206 = vadd.f32 %v1185, %v1202
      %v1207 = vadd.f32 %v1186, %v1203
      %v1208 = vadd.f32 %v1187, %v1204
      %s1209 = scalar_lea.vmem %s5, 80
      %v1210 = vld [vmem:[%s1209] sm:$0xff]
      %v1211 = vld [vmem:[%s1209 + $0x8] sm:$0xff]
      %1213 = vset.pattern.permute.xlu0 0
      %1214 = vperm.xlu0 %1213, %v1210
      %v1215 = vpop.permute.xlu0 %1214
      %1218 = vset.pattern.permute.xlu0 0
      %1219 = vperm.xlu0 %1218, %v1211
      %v1220 = vpop.permute.xlu0 %1219
      %v1222 = vmul.f32 %v891, %v1215
      %v1223 = vmul.f32 %v892, %v1215
      %v1224 = vmul.f32 %v893, %v1220
      %v1225 = vmul.f32 %v894, %v1220
      %v1226 = vadd.f32 %v1205, %v1222
      %v1227 = vadd.f32 %v1206, %v1223
      %v1228 = vadd.f32 %v1207, %v1224
      %v1229 = vadd.f32 %v1208, %v1225
      %s1230 = scalar_lea.vmem %s5, 112
      %v1231 = vld [vmem:[%s1230] sm:$0xff]
      %v1232 = vld [vmem:[%s1230 + $0x8] sm:$0xff]
      %1234 = vset.pattern.permute.xlu0 0
      %1235 = vperm.xlu0 %1234, %v1231
      %v1236 = vpop.permute.xlu0 %1235
      %1239 = vset.pattern.permute.xlu0 0
      %1240 = vperm.xlu0 %1239, %v1232
      %v1241 = vpop.permute.xlu0 %1240
      %v1243 = vmul.f32 %v827, %v1236
      %v1244 = vmul.f32 %v828, %v1236
      %v1245 = vmul.f32 %v829, %v1241
      %v1246 = vmul.f32 %v830, %v1241
      %v1247 = vadd.f32 %v1226, %v1243
      %v1248 = vadd.f32 %v1227, %v1244
      %v1249 = vadd.f32 %v1228, %v1245
      %v1250 = vadd.f32 %v1229, %v1246
      %s1251 = scalar_lea.vmem %s5, 144
      %v1252 = vld [vmem:[%s1251] sm:$0xff]
      %v1253 = vld [vmem:[%s1251 + $0x8] sm:$0xff]
      %1255 = vset.pattern.permute.xlu0 0
      %1256 = vperm.xlu0 %1255, %v1252
      %v1257 = vpop.permute.xlu0 %1256
      %1260 = vset.pattern.permute.xlu0 0
      %1261 = vperm.xlu0 %1260, %v1253
      %v1262 = vpop.permute.xlu0 %1261
      %v1264 = vmul.f32 %v811, %v1257
      %v1265 = vmul.f32 %v812, %v1257
      %v1266 = vmul.f32 %v813, %v1262
      %v1267 = vmul.f32 %v814, %v1262
      %v1268 = vadd.f32 %v1247, %v1264
      %v1269 = vadd.f32 %v1248, %v1265
      %v1270 = vadd.f32 %v1249, %v1266
      %v1271 = vadd.f32 %v1250, %v1267
      %s1272 = scalar_lea.vmem %s5, 176
      %v1273 = vld [vmem:[%s1272] sm:$0xff]
      %v1274 = vld [vmem:[%s1272 + $0x8] sm:$0xff]
      %1276 = vset.pattern.permute.xlu0 0
      %1277 = vperm.xlu0 %1276, %v1273
      %v1278 = vpop.permute.xlu0 %1277
      %1281 = vset.pattern.permute.xlu0 0
      %1282 = vperm.xlu0 %1281, %v1274
      %v1283 = vpop.permute.xlu0 %1282
      %v1285 = vmul.f32 %v843, %v1278
      %v1286 = vmul.f32 %v844, %v1278
      %v1287 = vmul.f32 %v845, %v1283
      %v1288 = vmul.f32 %v846, %v1283
      %v1289 = vadd.f32 %v1268, %v1285
      %v1290 = vadd.f32 %v1269, %v1286
      %v1291 = vadd.f32 %v1270, %v1287
      %v1292 = vadd.f32 %v1271, %v1288
      %s1293 = scalar_lea.vmem %s5, 208
      %v1294 = vld [vmem:[%s1293] sm:$0xff]
      %v1295 = vld [vmem:[%s1293 + $0x8] sm:$0xff]
      %1297 = vset.pattern.permute.xlu0 0
      %1298 = vperm.xlu0 %1297, %v1294
      %v1299 = vpop.permute.xlu0 %1298
      %1302 = vset.pattern.permute.xlu0 0
      %1303 = vperm.xlu0 %1302, %v1295
      %v1304 = vpop.permute.xlu0 %1303
      %v1306 = vmul.f32 %v907, %v1299
      %v1307 = vmul.f32 %v908, %v1299
      %v1308 = vmul.f32 %v909, %v1304
      %v1309 = vmul.f32 %v910, %v1304
      %v1310 = vadd.f32 %v1289, %v1306
      %v1311 = vadd.f32 %v1290, %v1307
      %v1312 = vadd.f32 %v1291, %v1308
      %v1313 = vadd.f32 %v1292, %v1309
      %s1314 = scalar_lea.vmem %s5, 240
      %v1315 = vld [vmem:[%s1314] sm:$0xff]
      %v1316 = vld [vmem:[%s1314 + $0x8] sm:$0xff]
      %1318 = vset.pattern.permute.xlu0 0
      %1319 = vperm.xlu0 %1318, %v1315
      %v1320 = vpop.permute.xlu0 %1319
      %1323 = vset.pattern.permute.xlu0 0
      %1324 = vperm.xlu0 %1323, %v1316
      %v1325 = vpop.permute.xlu0 %1324
      %v1327 = vmul.f32 %v923, %v1320
      %v1328 = vmul.f32 %v924, %v1320
      %v1329 = vmul.f32 %v925, %v1325
      %v1330 = vmul.f32 %v926, %v1325
      %v1331 = vadd.f32 %v1310, %v1327
      %v1332 = vadd.f32 %v1311, %v1328
      %v1333 = vadd.f32 %v1312, %v1329
      %v1334 = vadd.f32 %v1313, %v1330
      %s1335 = scalar_lea.vmem %s5, 272
      %v1336 = vld [vmem:[%s1335] sm:$0xff]
      %v1337 = vld [vmem:[%s1335 + $0x8] sm:$0xff]
      %1339 = vset.pattern.permute.xlu0 0
      %1340 = vperm.xlu0 %1339, %v1336
      %v1341 = vpop.permute.xlu0 %1340
      %1344 = vset.pattern.permute.xlu0 0
      %1345 = vperm.xlu0 %1344, %v1337
      %v1346 = vpop.permute.xlu0 %1345
      %v1348 = vmul.f32 %v939, %v1341
      %v1349 = vmul.f32 %v940, %v1341
      %v1350 = vmul.f32 %v941, %v1346
      %v1351 = vmul.f32 %v942, %v1346
      %v1352 = vadd.f32 %v1331, %v1348
      %v1353 = vadd.f32 %v1332, %v1349
      %v1354 = vadd.f32 %v1333, %v1350
      %v1355 = vadd.f32 %v1334, %v1351
      %s1356 = scalar_lea.vmem %s6, 16
      %v1357 = vld [vmem:[%s1356] sm:$0xff]
      %v1358 = vld [vmem:[%s1356 + $0x8] sm:$0xff]
      %1360 = vset.pattern.permute.xlu0 0
      %1361 = vperm.xlu0 %1360, %v1357
      %v1362 = vpop.permute.xlu0 %1361
      %1365 = vset.pattern.permute.xlu0 0
      %1366 = vperm.xlu0 %1365, %v1358
      %v1367 = vpop.permute.xlu0 %1366
      %v1369 = vadd.f32 %v1352, %v1362
      %v1370 = vadd.f32 %v1353, %v1362
      %v1371 = vadd.f32 %v1354, %v1367
      %v1372 = vadd.f32 %v1355, %v1367
      %v1373 = vxor.u32 %v1369, 2147483648
      %v1374 = vxor.u32 %v1370, 2147483648
      %v1375 = vxor.u32 %v1371, 2147483648
      %v1376 = vxor.u32 %v1372, 2147483648
      %v1377 = vmul.f32 %v1373, 1.442695
      %v1378 = vpow.pop %v1377
      %v1379 = vmul.f32 %v1374, 1.442695
      %v1380 = vpow.pop %v1379
      %v1381 = vmul.f32 %v1375, 1.442695
      %v1382 = vpow.pop %v1381
      %v1383 = vmul.f32 %v1376, 1.442695
      %v1384 = vpow.pop %v1383
      %v1385 = vadd.f32 %v1378, 1.0
      %v1386 = vadd.f32 %v1380, 1.0
      %v1387 = vadd.f32 %v1382, 1.0
      %v1388 = vadd.f32 %v1384, 1.0
      %v1389 = vrcp.pop %v1385
      %v1390 = vmul.f32 1.0, %v1389
      %v1391 = vrcp.pop %v1386
      %v1392 = vmul.f32 1.0, %v1391
      %v1393 = vrcp.pop %v1387
      %v1394 = vmul.f32 1.0, %v1393
      %v1395 = vrcp.pop %v1388
      %v1396 = vmul.f32 1.0, %v1395
      %v1397 = vmul.f32 %v1369, %v1390
      %v1398 = vmul.f32 %v1370, %v1392
      %v1399 = vmul.f32 %v1371, %v1394
      %v1400 = vmul.f32 %v1372, %v1396
      %v1401 = vld [vmem:[%s7] sm:$0xf]
      %v1402 = vpack.c.bf16 %v1169, %v1167
      %v1403 = vpack.c.bf16 %v1170, %v1168
      %v1404 = vpack.c.bf16 %v1399, %v1397
      %v1405 = vpack.c.bf16 %v1400, %v1398
      %v1406 = vld [vmem:[%s8] sm:$0xff]
      %1408 = vset.pattern.permute.xlu0 0
      %1409 = vperm.xlu0 %1408, %v1406
      %v1410 = vpop.permute.xlu0 %1409
      %vm1412 = vcmask 261120
      %v1414 = vsel %vm1412, %v1401, 0
      %1416 = vmatprep.subr.bf16.mxu0 0
      %1417 = vmatpush1.bf16.msra.mxu0 0
      %1418 = vmatprep.subr.bf16.mxu0 0
      %1419 = vmatpush1.bf16.msra.mxu0 0
      %1420 = vmatprep.subr.bf16.mxu0 0
      %1421 = vmatpush1.bf16.msra.mxu0 0
      %1422 = vmatprep.subr.bf16.mxu0 0
      %1423 = vmatpush1.bf16.msra.mxu0 0
      %1424 = vmatprep.subr.bf16.mxu0 0
      %1425 = vmatpush1.bf16.msra.mxu0 0
      %1426 = vmatprep.subr.bf16.mxu0 0
      %1427 = vmatpush1.bf16.msra.mxu0 0
      %1428 = vmatprep.subr.bf16.mxu0 %v1405
      %1429 = vmatpush1.bf16.msra.mxu0 %v1404
      %1430 = vmatprep.subr.bf16.mxu0 %v1403
      %1431 = vmatpush1.bf16.msra.mxu0 %v1402
      %1432 = vmatprep.subr.bf16.mxu0 0
      %1433 = vmatpush2.bf16.msra.mxu0 0
      %1434 = vmatprep.subr.bf16.mxu0 0
      %1435 = vmatpush2.bf16.msra.mxu0 0
      %1436 = vmatprep.subr.bf16.mxu0 0
      %1437 = vmatpush2.bf16.msra.mxu0 0
      %1438 = vmatprep.subr.bf16.mxu0 0
      %1439 = vmatpush2.bf16.msra.mxu0 0
      %1440 = vmatprep.subr.bf16.mxu0 0
      %1441 = vmatpush2.bf16.msra.mxu0 0
      %1442 = vmatprep.subr.bf16.mxu0 0
      %1443 = vmatpush2.bf16.msra.mxu0 0
      %1444 = vmatprep.subr.bf16.mxu0 0
      %1445 = vmatpush2.bf16.msra.mxu0 0
      %1446 = vmatprep.subr.bf16.mxu0 0
      %1447 = vmatpush2.bf16.msra.mxu0 0
      %1448 = vmatprep.mubr.bf16.mxu0 0
      %1449 = vmatmul.mubr.bf16.gmra.mxu0 %v1414
      %v1450 = vpop.f32.mrf.mxu0
      %v1451 = vadd.f32 %v1410, %v1450
      %v1452 = vpop.f32.mrf.mxu0
      %v1453 = vadd.f32 %v1410, %v1452
      %v1454 = vpop.f32.mrf.mxu0
      %v1455 = vpop.f32.mrf.mxu0
      %1456 = vdwg.mxu0
      %v1457 = vld [vmem:[%s9] sm:$0xff]
      %v1458 = vld [vmem:[%s10] sm:$0xff]
      %v1459 = vadd.f32 %v1451, %v1453
      %1460 = vadd.xlane.f32.xlu0 %v1459
      %v1461 = vpop.xlane.xlu0 %1460
      %v1462 = vmul.f32 %v1461, 0.00390625
      %v1463 = vmul.f32 %v1457, %v1462
      %vm1464 = vcmask 15360
      %v1465 = vsel %vm1464, %v1463, 0.0
      %v1466 = vrot.slane %v1465, 4
      %v1467 = vadd.f32 %v1465, %v1466
      %v1468 = vrot.slane %v1467, 2
      %v1469 = vadd.f32 %v1467, %v1468
      %v1470 = vrot.slane %v1469, 1
      %v1471 = vadd.f32 %v1469, %v1470
      %v1472 = vxor.u32 %v1471, 2147483648
      %v1473 = vmul.f32 %v1472, 1.442695
      %v1474 = vpow.pop %v1473
      %v1475 = vadd.f32 %v1474, 1.0
      %v1476 = vrcp.pop %v1475
      %v1477 = vmul.f32 1.0, %v1476
      %v1478 = vmul.f32 %v1471, %v1477
      %v1479 = vmul.f32 %v1458, %v1478
      %v1480 = vsel %vm1464, %v1479, 0.0
      %1481 = vadd.xlane.f32.xlu0 %v1480
      %v1482 = vpop.xlane.xlu0 %1481
      %v1483 = vxor.u32 %v1482, 2147483648
      %v1484 = vmul.f32 %v1483, 1.442695
      %v1485 = vpow.pop %v1484
      %v1486 = vadd.f32 %v1485, 1.0
      %v1487 = vrcp.pop %v1486
      %v1488 = vmul.f32 1.0, %v1487
      %v1489 = vmul.f32 %v1451, %v1488
      %v1490 = vmul.f32 %v1453, %v1488
      %v1491 = vadd.f32 %v411, %v1489
      %v1492 = vadd.f32 %v412, %v1490
      %v1493 = vxor.u32 %v1491, 2147483648
      %v1494 = vxor.u32 %v1492, 2147483648
      %v1495 = vmul.f32 %v1493, 1.442695
      %v1496 = vpow.pop %v1495
      %v1497 = vmul.f32 %v1494, 1.442695
      %v1498 = vpow.pop %v1497
      %v1499 = vadd.f32 %v1496, 1.0
      %v1500 = vadd.f32 %v1498, 1.0
      %v1501 = vrcp.pop %v1499
      %v1502 = vmul.f32 1.0, %v1501
      %v1503 = vrcp.pop %v1500
      %v1504 = vmul.f32 1.0, %v1503
      %v1505 = vmul.f32 %v1491, %v1502
      %v1506 = vmul.f32 %v1492, %v1504
      %1507 = vst [vmem:[%s386] sm:$0xff] %v1505
      %1508 = vst [vmem:[%s386 + $0x8] sm:$0xff] %v1506
      %p1509 = scmp.lt.s32.totalorder %s22, 1
      %s1510 = scalar_select %p1509, %s22, 1
      %s1511 = smul.addr %s1510, 2
      %s1512 = smul.addr %s1511, 8
      %s1513 = scalar_lea.vmem %s11, %s1512
      // Predicated region
      $region65: #{vargnet_block_fwd.1} parent=63 // pred_check
        %p1514 = pneg %p276
      $region66: #{vargnet_block_fwd.1} parent=63 // pred_check_branch
        %1516 = sbr.rel (%p1514) target = $region68
      $region67: #{vargnet_block_fwd.1} parent=63 // pred_region
        _
      $region68: #{vargnet_block_fwd.1} parent=63 // pred_fallthru
        _
    $region64: #{vargnet_block_fwd.1} parent=5 // pred_fallthru
      _
    %p1517 = scmp.le.s32.totalorder 2, %s17
    // Predicated region
    $region69: #{vargnet_block_fwd.1} parent=5 // pred_check
      %p1518 = pneg %p1517
    $region70: #{vargnet_block_fwd.1} parent=5 // pred_check_branch
      %1520 = sbr.rel (%p1518) target = $region72
    $region71: #{vargnet_block_fwd.1} parent=5 // pred_region
      %s1521 = ssub.s32 %s17, 2
      // Predicated region
      $region73: #{vargnet_block_fwd.1} parent=71 // pred_check
        %p1522 = pneg %p282
      $region74: #{vargnet_block_fwd.1} parent=71 // pred_check_branch
        %1524 = sbr.rel (%p1522) target = $region76
      $region75: #{vargnet_block_fwd.1} parent=71 // pred_region
        %p1525 = scmp.lt.s32.totalorder %s23, 1
        %s1526 = scalar_select %p1525, %s23, 1
        %s1527 = smul.addr %s1526, 2
        %s1528 = smul.addr %s1527, 8
        %s1529 = scalar_lea.vmem %s11, %s1528
      $region76: #{vargnet_block_fwd.1} parent=71 // pred_fallthru
        _
    $region72: #{vargnet_block_fwd.1} parent=5 // pred_fallthru
      _
  $region6: #{vargnet_block_fwd.1} parent=0 // loop_footer
    %s21 = sadd.s32 1, %s17
  $region7: #{vargnet_block_fwd.1} parent=0 // loop_footer_branch
    %16 = sbr.rel target = $region3
  $region8: #{vargnet_block_fwd.1} parent=0 // loop_exit
    _

</llo_original>
